<compile_context>
chip_gen: v5e
topology: v5e:2x2
jax: 0.10.0
libtpu: 0.0.40
codegen_flags: <defaults>
</compile_context>

<pallas_src>
import functools
import math

import jax
import jax.numpy as jnp
from jax import lax
from jax.experimental import pallas as pl
from jax.experimental.pallas import tpu as pltpu

# flow = sigmoid([[-10,10,-10],[10,10,10],[-10,10,-10]]): only two distinct
# values.  sigmoid(+10) is folded into the gather map (wrapper); only the
# ratio survives into the kernel as a literal.
_SIG_POS = 1.0 / (1.0 + math.exp(-10.0))
_SIG_NEG = 1.0 / (1.0 + math.exp(10.0))
_RATIO = _SIG_NEG / _SIG_POS


def _mvprop_kernel(border_ref, gather_ref, reward_ref, value_out, *,
                   ratio, n_iterations, unroll):
    """One grid step: value propagation on a lane/sublane-folded (RH, L) tile."""
    _, RH, L = gather_ref.shape
    gather = gather_ref[0]          # (RH, L) = gather_map * gamma * sigmoid(+10)
    reward = reward_ref[0]          # (RH, L) normalized reward locations
    code = border_ref[...]          # (RH, L) int32 bit-coded border map

    # Loop-invariant validity masks (hoisted): a neighbour is valid iff it does
    # not cross the original HxW image border; rolls that wrap across folded
    # batches / the tile edge land exactly on these border positions, so the
    # same mask zeroes them -- matching the reference's zero padding.
    up_ok = (code & 1) == 0         # row-in-image > 0      -> v[h-1, w] valid
    dn_ok = (code & 2) == 0         # row-in-image < H - 1  -> v[h+1, w] valid
    lf_ok = (code & 4) == 0         # col-in-image > 0      -> v[h, w-1] valid
    rt_ok = (code & 8) == 0         # col-in-image < W - 1  -> v[h, w+1] valid

    def body(_, v):
        # Factored rolls: 2 lane rolls, then 2 sublane rolls per column variant
        # (8 XLU ops / iteration).  Column masks only depend on the lane index,
        # so they can be applied before the sublane rolls.
        cL = jnp.where(lf_ok, pltpu.roll(v, 1, axis=1), 0.0)        # v[h, w-1]
        cR = jnp.where(rt_ok, pltpu.roll(v, L - 1, axis=1), 0.0)    # v[h, w+1]
        up = jnp.where(up_ok, pltpu.roll(v, 1, axis=0), 0.0)        # v[h-1, w]
        dn = jnp.where(dn_ok, pltpu.roll(v, RH - 1, axis=0), 0.0)   # v[h+1, w]
        # "+"-shaped neighbours (incl. centre, which needs no mask) all share
        # coefficient gamma*sigmoid(+10).
        plus = jnp.maximum(jnp.maximum(v, jnp.maximum(up, dn)),
                           jnp.maximum(cL, cR))
        # Diagonal neighbours share coefficient gamma*sigmoid(-10).
        ul = jnp.where(up_ok, pltpu.roll(cL, 1, axis=0), 0.0)       # v[h-1,w-1]
        dl = jnp.where(dn_ok, pltpu.roll(cL, RH - 1, axis=0), 0.0)  # v[h+1,w-1]
        ur = jnp.where(up_ok, pltpu.roll(cR, 1, axis=0), 0.0)       # v[h-1,w+1]
        dr = jnp.where(dn_ok, pltpu.roll(cR, RH - 1, axis=0), 0.0)  # v[h+1,w+1]
        diag = jnp.maximum(jnp.maximum(ul, dl), jnp.maximum(ur, dr))
        # candidate = gather * max_{3x3}(gamma * flow * neighbour)
        #           = (gather*gamma*sig+) * max(plus, (sig-/sig+) * diag)
        # (all values / coefficients are >= 0, so max distributes over the
        #  positive scalar coefficients).
        cand = gather * jnp.maximum(plus, ratio * diag)
        return jnp.maximum(cand, v)

    v = lax.fori_loop(0, n_iterations, body, reward, unroll=unroll)
    value_out[0] = jnp.maximum(v - reward, 0.0)      # relu(value_map - reward)


def _choose_fold(B, H, W):
    """Pick (bh, bw) so the folded tile (bh*H, bw*W) is (8,128)-aligned."""
    bw = 128 // math.gcd(W, 128)     # smallest lane fold with (bw*W) % 128 == 0
    bh = 8 // math.gcd(H, 8)         # smallest sublane fold with (bh*H) % 8 == 0
    # Safety valve: the whole spatial map must stay resident (rolls are global),
    # so keep a single folded f32 map well inside VMEM.
    if bh * H * bw * W * 4 > (4 << 20):
        bw = 1
    # Grow the sublane fold to amortize per-grid-step overhead (~0.35us/step),
    # but keep >= 2 grid steps so both v7x TensorCores stay busy.
    def n_groups(bh_):
        return -(-B // (bh_ * bw))
    while n_groups(2 * bh) >= 2 and (2 * bh * H) * (bw * W) * 4 <= (256 << 10):
        bh *= 2
    return bh, bw


@functools.partial(jax.jit, static_argnames=("n_iterations", "hard_gather_map"))
def mvprop2d_forward(image, rewarding_states, params, n_iterations=10,
                     hard_gather_map=False):
    B, H, W, E = image.shape
    f32 = jnp.float32

    # ---- SigmoidMasking (hoisted to XLA: E is tiny, worst layout for kernel) --
    logits = jnp.einsum("bhwe,e->bhw", image,
                        params["gather_weight"].astype(image.dtype))
    gather = jax.nn.sigmoid(logits.astype(f32) + params["gather_bias"].astype(f32))
    if hard_gather_map:
        gather = (gather > 0.5).astype(f32)

    # ---- Readjustment: relu(x - bias) then per-batch spatial min/max norm ----
    r = jnp.maximum(rewarding_states[..., 0].astype(f32)
                    - params["adjust_bias"].astype(f32), 0.0)
    rmin = jnp.min(r, axis=(1, 2), keepdims=True)
    rmax = jnp.max(r, axis=(1, 2), keepdims=True)
    reward_loc = (r - rmin) / (rmax - rmin + 0.0001)              # (B, H, W)

    # ---- fold gamma*sigmoid(+10) into the gather map (scalar mul, hoisted) ---
    gamma = jax.nn.sigmoid(params["gamma_weight"].astype(f32))
    gather_scaled = gather * (gamma * _SIG_POS)

    # ---- (8,128)-aligned batch fold: (B,H,W) -> (nb, bh*H, bw*W) + dummy pad --
    bh, bw = _choose_fold(B, H, W)
    group = bh * bw
    nb = -(-B // group)
    padB, RH, L = nb * group, bh * H, bw * W

    def fold(x):                      # (B,H,W) -> (nb, RH, L)
        if padB != B:
            x = jnp.concatenate([x, jnp.zeros((padB - B, H, W), x.dtype)], 0)
        x = x.reshape(nb, bh, bw, H, W).transpose(0, 1, 3, 2, 4)
        return x.reshape(nb, RH, L)

    def unfold(x):                    # (nb, RH, L) -> (B,H,W)
        x = x.reshape(nb, bh, H, bw, W).transpose(0, 1, 3, 2, 4)
        return x.reshape(padB, H, W)[:B]

    # ---- single bit-coded border map (replaces the old 9 coefficient masks) --
    row = jnp.arange(RH, dtype=jnp.int32)[:, None] % H            # (RH, 1)
    col = jnp.arange(L, dtype=jnp.int32)[None, :] % W             # (1, L)
    border = ((row == 0).astype(jnp.int32)
              + 2 * (row == H - 1).astype(jnp.int32)
              + 4 * (col == 0).astype(jnp.int32)
              + 8 * (col == W - 1).astype(jnp.int32))             # (RH, L) i32

    # unroll fully only while the per-map vreg footprint is small
    vregs_per_map = pl.cdiv(RH, 8) * pl.cdiv(L, 128)
    unroll = True if vregs_per_map <= 8 else 2

    kernel = functools.partial(_mvprop_kernel, ratio=_RATIO,
                               n_iterations=n_iterations, unroll=unroll)

    cp = dict(dimension_semantics=("parallel",))
    vmem_need = 8 * RH * L * 4 + (2 << 20)    # 3 f32 maps double-buffered + misc
    if vmem_need > (16 << 20):
        cp["vmem_limit_bytes"] = int(min(vmem_need, 64 << 20))

    value = pl.pallas_call(
        kernel,
        out_shape=jax.ShapeDtypeStruct((nb, RH, L), f32),
        grid_spec=pltpu.PrefetchScalarGridSpec(
            num_scalar_prefetch=0,
            grid=(nb,),
            in_specs=[
                pl.BlockSpec((RH, L), lambda i: (0, 0)),       # border (constant)
                pl.BlockSpec((1, RH, L), lambda i: (i, 0, 0)),  # gather*gamma*sig+
                pl.BlockSpec((1, RH, L), lambda i: (i, 0, 0)),  # reward locations
            ],
            out_specs=pl.BlockSpec((1, RH, L), lambda i: (i, 0, 0))),
        compiler_params=pltpu.CompilerParams(**cp),
    )(border, fold(gather_scaled), fold(reward_loc))

    value_map = unfold(value)
    return gather[..., None], value_map[..., None], reward_loc[..., None]


def mvprop2d_reference(image, rewarding_states, params, n_iterations=10,
                       hard_gather_map=False):
    # Plain-JAX re-statement of the PyTorch forward (correctness check).
    B, H, W, E = image.shape
    gamma = jax.nn.sigmoid(params["gamma_weight"])
    flow = jax.nn.sigmoid(jnp.array([[-10.0, 10.0, -10.0],
                                     [10.0, 10.0, 10.0],
                                     [-10.0, 10.0, -10.0]], jnp.float32))
    gather = jax.nn.sigmoid(
        jnp.einsum("bhwe,e->bhw", image, params["gather_weight"]) + params["gather_bias"])
    if hard_gather_map:
        gather = (gather > 0.5).astype(jnp.float32)
    r = jnp.maximum(rewarding_states[..., 0] - params["adjust_bias"], 0.0)
    rmin = jnp.min(r, axis=(1, 2), keepdims=True)
    rmax = jnp.max(r, axis=(1, 2), keepdims=True)
    rl = (r - rmin) / (rmax - rmin + 0.0001)
    v = rl
    for _ in range(n_iterations):
        vp = jnp.pad(v, ((0, 0), (1, 1), (1, 1)))
        best = None
        for a in range(3):
            for b in range(3):
                c = gamma * vp[:, a:a + H, b:b + W] * flow[a, b]
                best = c if best is None else jnp.maximum(best, c)
        v = jnp.maximum(gather * best, v)
    value = jnp.maximum(v - rl, 0.0)
    return gather[..., None], value[..., None], rl[..., None]


if __name__ == "__main__":
    B, H, W, E = 2, 16, 16, 4
    key = jax.random.PRNGKey(0)
    k_img, k_rew, k_w, k_b = jax.random.split(key, 4)

    image = jax.random.normal(k_img, (B, H, W, E), jnp.float32)
    # sparse "rewarding states" map, shape [B, H, W, 1]
    rewarding_states = (jax.random.uniform(k_rew, (B, H, W, 1)) > 0.95).astype(jnp.float32)

    # Deterministic parameter init (module __init__ shapes):
    #   Gamma.weight: scalar 1.0 ; Readjustment.adjust_bias: scalar 0.0
    #   SigmoidMasking.linear: weight (1, E) stored as (E,), bias scalar
    bound = 1.0 / (E ** 0.5)
    params = {
        "gamma_weight": jnp.asarray(1.0, jnp.float32),
        "adjust_bias": jnp.asarray(0.0, jnp.float32),
        "gather_weight": jax.random.uniform(k_w, (E,), jnp.float32, -bound, bound),
        "gather_bias": jax.random.uniform(k_b, (), jnp.float32, -bound, bound),
    }

    for hard in (False, True):
        outs = jax.block_until_ready(
            mvprop2d_forward(image, rewarding_states, params,
                             n_iterations=10, hard_gather_map=hard))
        refs = mvprop2d_reference(image, rewarding_states, params,
                                  n_iterations=10, hard_gather_map=hard)
        for name, o, rref in zip(("gather_map", "value_map", "reward_locations"),
                                 outs, refs):
            assert o.shape == rref.shape, (name, hard, o.shape, rref.shape)
            assert jnp.allclose(o, rref, atol=1e-5), f"{name} mismatch (hard={hard})"

    print("KERNEL_OK")
</pallas_src>

<mosaic_0001>
module attributes {stable_mosaic.version = 11 : i64} {
  func.func @_mvprop_kernel(%arg0: i32, %arg1: memref<16x128xi32, #tpu.memory_space<vmem>>, %arg2: memref<1x16x128xf32, #tpu.memory_space<vmem>>, %arg3: memref<1x16x128xf32, #tpu.memory_space<vmem>>, %arg4: memref<1x16x128xf32, #tpu.memory_space<vmem>>) attributes {dimension_semantics = [#tpu.dimension_semantics<parallel>], iteration_bounds = array<i64: 1>, scalar_prefetch = 0 : i64, scratch_operands = 0 : i64, tpu.core_type = #tpu.core_type<tc>, window_params = [{pipeline_mode = #tpu.pipeline_mode<synchronous>, transform_indices = @transform_0, window_bounds = array<i64: 16, 128>}, {transform_indices = @transform_1, window_bounds = array<i64: 1, 16, 128>}, {transform_indices = @transform_2, window_bounds = array<i64: 1, 16, 128>}, {transform_indices = @transform_3, window_bounds = array<i64: 1, 16, 128>}]} {
    %c0 = arith.constant 0 : index
    %c0_0 = arith.constant 0 : index
    %c0_1 = arith.constant 0 : index
    %0 = vector.load %arg2[%c0, %c0_0, %c0_1] : memref<1x16x128xf32, #tpu.memory_space<vmem>>, vector<1x16x128xf32>
    %1 = vector.shape_cast %0 : vector<1x16x128xf32> to vector<16x128xf32>
    %c0_2 = arith.constant 0 : index
    %c0_3 = arith.constant 0 : index
    %c0_4 = arith.constant 0 : index
    %2 = vector.load %arg3[%c0_2, %c0_3, %c0_4] : memref<1x16x128xf32, #tpu.memory_space<vmem>>, vector<1x16x128xf32>
    %3 = vector.shape_cast %2 : vector<1x16x128xf32> to vector<16x128xf32>
    %c0_5 = arith.constant 0 : index
    %c0_6 = arith.constant 0 : index
    %4 = vector.load %arg1[%c0_5, %c0_6] : memref<16x128xi32, #tpu.memory_space<vmem>>, vector<16x128xi32>
    %c1_i32 = arith.constant 1 : i32
    %5 = vector.broadcast %c1_i32 : i32 to vector<16x128xi32>
    %6 = arith.andi %4, %5 : vector<16x128xi32>
    %c0_i32 = arith.constant 0 : i32
    %7 = vector.broadcast %c0_i32 : i32 to vector<16x128xi32>
    %8 = arith.cmpi eq, %6, %7 : vector<16x128xi32>
    %c2_i32 = arith.constant 2 : i32
    %9 = vector.broadcast %c2_i32 : i32 to vector<16x128xi32>
    %10 = arith.andi %4, %9 : vector<16x128xi32>
    %c0_i32_7 = arith.constant 0 : i32
    %11 = vector.broadcast %c0_i32_7 : i32 to vector<16x128xi32>
    %12 = arith.cmpi eq, %10, %11 : vector<16x128xi32>
    %c4_i32 = arith.constant 4 : i32
    %13 = vector.broadcast %c4_i32 : i32 to vector<16x128xi32>
    %14 = arith.andi %4, %13 : vector<16x128xi32>
    %c0_i32_8 = arith.constant 0 : i32
    %15 = vector.broadcast %c0_i32_8 : i32 to vector<16x128xi32>
    %16 = arith.cmpi eq, %14, %15 : vector<16x128xi32>
    %c8_i32 = arith.constant 8 : i32
    %17 = vector.broadcast %c8_i32 : i32 to vector<16x128xi32>
    %18 = arith.andi %4, %17 : vector<16x128xi32>
    %c0_i32_9 = arith.constant 0 : i32
    %19 = vector.broadcast %c0_i32_9 : i32 to vector<16x128xi32>
    %20 = arith.cmpi eq, %18, %19 : vector<16x128xi32>
    %c0_i32_10 = arith.constant 0 : i32
    %c1_i32_11 = arith.constant 1 : i32
    %21 = tpu.dynamic_rotate %3 by %c1_i32_11 dim 1 : vector<16x128xf32>, i32 -> vector<16x128xf32>
    %cst = arith.constant 0.000000e+00 : f32
    %22 = vector.broadcast %cst : f32 to vector<16x128xf32>
    %23 = arith.select %16, %21, %22 : vector<16x128xi1>, vector<16x128xf32>
    %c127_i32 = arith.constant 127 : i32
    %24 = tpu.dynamic_rotate %3 by %c127_i32 dim 1 : vector<16x128xf32>, i32 -> vector<16x128xf32>
    %cst_12 = arith.constant 0.000000e+00 : f32
    %25 = vector.broadcast %cst_12 : f32 to vector<16x128xf32>
    %26 = arith.select %20, %24, %25 : vector<16x128xi1>, vector<16x128xf32>
    %c1_i32_13 = arith.constant 1 : i32
    %27 = tpu.dynamic_rotate %3 by %c1_i32_13 dim 0 : vector<16x128xf32>, i32 -> vector<16x128xf32>
    %cst_14 = arith.constant 0.000000e+00 : f32
    %28 = vector.broadcast %cst_14 : f32 to vector<16x128xf32>
    %29 = arith.select %8, %27, %28 : vector<16x128xi1>, vector<16x128xf32>
    %c15_i32 = arith.constant 15 : i32
    %30 = tpu.dynamic_rotate %3 by %c15_i32 dim 0 : vector<16x128xf32>, i32 -> vector<16x128xf32>
    %cst_15 = arith.constant 0.000000e+00 : f32
    %31 = vector.broadcast %cst_15 : f32 to vector<16x128xf32>
    %32 = arith.select %12, %30, %31 : vector<16x128xi1>, vector<16x128xf32>
    %33 = arith.maximumf %29, %32 : vector<16x128xf32>
    %34 = arith.maximumf %3, %33 : vector<16x128xf32>
    %35 = arith.maximumf %23, %26 : vector<16x128xf32>
    %36 = arith.maximumf %34, %35 : vector<16x128xf32>
    %c1_i32_16 = arith.constant 1 : i32
    %37 = tpu.dynamic_rotate %23 by %c1_i32_16 dim 0 : vector<16x128xf32>, i32 -> vector<16x128xf32>
    %cst_17 = arith.constant 0.000000e+00 : f32
    %38 = vector.broadcast %cst_17 : f32 to vector<16x128xf32>
    %39 = arith.select %8, %37, %38 : vector<16x128xi1>, vector<16x128xf32>
    %c15_i32_18 = arith.constant 15 : i32
    %40 = tpu.dynamic_rotate %23 by %c15_i32_18 dim 0 : vector<16x128xf32>, i32 -> vector<16x128xf32>
    %cst_19 = arith.constant 0.000000e+00 : f32
    %41 = vector.broadcast %cst_19 : f32 to vector<16x128xf32>
    %42 = arith.select %12, %40, %41 : vector<16x128xi1>, vector<16x128xf32>
    %c1_i32_20 = arith.constant 1 : i32
    %43 = tpu.dynamic_rotate %26 by %c1_i32_20 dim 0 : vector<16x128xf32>, i32 -> vector<16x128xf32>
    %cst_21 = arith.constant 0.000000e+00 : f32
    %44 = vector.broadcast %cst_21 : f32 to vector<16x128xf32>
    %45 = arith.select %8, %43, %44 : vector<16x128xi1>, vector<16x128xf32>
    %c15_i32_22 = arith.constant 15 : i32
    %46 = tpu.dynamic_rotate %26 by %c15_i32_22 dim 0 : vector<16x128xf32>, i32 -> vector<16x128xf32>
    %cst_23 = arith.constant 0.000000e+00 : f32
    %47 = vector.broadcast %cst_23 : f32 to vector<16x128xf32>
    %48 = arith.select %12, %46, %47 : vector<16x128xi1>, vector<16x128xf32>
    %49 = arith.maximumf %39, %42 : vector<16x128xf32>
    %50 = arith.maximumf %45, %48 : vector<16x128xf32>
    %51 = arith.maximumf %49, %50 : vector<16x128xf32>
    %cst_24 = arith.constant 4.5399931E-5 : f32
    %52 = vector.broadcast %cst_24 : f32 to vector<16x128xf32>
    %53 = arith.mulf %52, %51 : vector<16x128xf32>
    %54 = arith.maximumf %36, %53 : vector<16x128xf32>
    %55 = arith.mulf %1, %54 : vector<16x128xf32>
    %56 = arith.maximumf %55, %3 : vector<16x128xf32>
    %c1_i32_25 = arith.constant 1 : i32
    %c1_i32_26 = arith.constant 1 : i32
    %57 = tpu.dynamic_rotate %56 by %c1_i32_26 dim 1 : vector<16x128xf32>, i32 -> vector<16x128xf32>
    %cst_27 = arith.constant 0.000000e+00 : f32
    %58 = vector.broadcast %cst_27 : f32 to vector<16x128xf32>
    %59 = arith.select %16, %57, %58 : vector<16x128xi1>, vector<16x128xf32>
    %c127_i32_28 = arith.constant 127 : i32
    %60 = tpu.dynamic_rotate %56 by %c127_i32_28 dim 1 : vector<16x128xf32>, i32 -> vector<16x128xf32>
    %cst_29 = arith.constant 0.000000e+00 : f32
    %61 = vector.broadcast %cst_29 : f32 to vector<16x128xf32>
    %62 = arith.select %20, %60, %61 : vector<16x128xi1>, vector<16x128xf32>
    %c1_i32_30 = arith.constant 1 : i32
    %63 = tpu.dynamic_rotate %56 by %c1_i32_30 dim 0 : vector<16x128xf32>, i32 -> vector<16x128xf32>
    %cst_31 = arith.constant 0.000000e+00 : f32
    %64 = vector.broadcast %cst_31 : f32 to vector<16x128xf32>
    %65 = arith.select %8, %63, %64 : vector<16x128xi1>, vector<16x128xf32>
    %c15_i32_32 = arith.constant 15 : i32
    %66 = tpu.dynamic_rotate %56 by %c15_i32_32 dim 0 : vector<16x128xf32>, i32 -> vector<16x128xf32>
    %cst_33 = arith.constant 0.000000e+00 : f32
    %67 = vector.broadcast %cst_33 : f32 to vector<16x128xf32>
    %68 = arith.select %12, %66, %67 : vector<16x128xi1>, vector<16x128xf32>
    %69 = arith.maximumf %65, %68 : vector<16x128xf32>
    %70 = arith.maximumf %56, %69 : vector<16x128xf32>
    %71 = arith.maximumf %59, %62 : vector<16x128xf32>
    %72 = arith.maximumf %70, %71 : vector<16x128xf32>
    %c1_i32_34 = arith.constant 1 : i32
    %73 = tpu.dynamic_rotate %59 by %c1_i32_34 dim 0 : vector<16x128xf32>, i32 -> vector<16x128xf32>
    %cst_35 = arith.constant 0.000000e+00 : f32
    %74 = vector.broadcast %cst_35 : f32 to vector<16x128xf32>
    %75 = arith.select %8, %73, %74 : vector<16x128xi1>, vector<16x128xf32>
    %c15_i32_36 = arith.constant 15 : i32
    %76 = tpu.dynamic_rotate %59 by %c15_i32_36 dim 0 : vector<16x128xf32>, i32 -> vector<16x128xf32>
    %cst_37 = arith.constant 0.000000e+00 : f32
    %77 = vector.broadcast %cst_37 : f32 to vector<16x128xf32>
    %78 = arith.select %12, %76, %77 : vector<16x128xi1>, vector<16x128xf32>
    %c1_i32_38 = arith.constant 1 : i32
    %79 = tpu.dynamic_rotate %62 by %c1_i32_38 dim 0 : vector<16x128xf32>, i32 -> vector<16x128xf32>
    %cst_39 = arith.constant 0.000000e+00 : f32
    %80 = vector.broadcast %cst_39 : f32 to vector<16x128xf32>
    %81 = arith.select %8, %79, %80 : vector<16x128xi1>, vector<16x128xf32>
    %c15_i32_40 = arith.constant 15 : i32
    %82 = tpu.dynamic_rotate %62 by %c15_i32_40 dim 0 : vector<16x128xf32>, i32 -> vector<16x128xf32>
    %cst_41 = arith.constant 0.000000e+00 : f32
    %83 = vector.broadcast %cst_41 : f32 to vector<16x128xf32>
    %84 = arith.select %12, %82, %83 : vector<16x128xi1>, vector<16x128xf32>
    %85 = arith.maximumf %75, %78 : vector<16x128xf32>
    %86 = arith.maximumf %81, %84 : vector<16x128xf32>
    %87 = arith.maximumf %85, %86 : vector<16x128xf32>
    %cst_42 = arith.constant 4.5399931E-5 : f32
    %88 = vector.broadcast %cst_42 : f32 to vector<16x128xf32>
    %89 = arith.mulf %88, %87 : vector<16x128xf32>
    %90 = arith.maximumf %72, %89 : vector<16x128xf32>
    %91 = arith.mulf %1, %90 : vector<16x128xf32>
    %92 = arith.maximumf %91, %56 : vector<16x128xf32>
    %c2_i32_43 = arith.constant 2 : i32
    %c1_i32_44 = arith.constant 1 : i32
    %93 = tpu.dynamic_rotate %92 by %c1_i32_44 dim 1 : vector<16x128xf32>, i32 -> vector<16x128xf32>
    %cst_45 = arith.constant 0.000000e+00 : f32
    %94 = vector.broadcast %cst_45 : f32 to vector<16x128xf32>
    %95 = arith.select %16, %93, %94 : vector<16x128xi1>, vector<16x128xf32>
    %c127_i32_46 = arith.constant 127 : i32
    %96 = tpu.dynamic_rotate %92 by %c127_i32_46 dim 1 : vector<16x128xf32>, i32 -> vector<16x128xf32>
    %cst_47 = arith.constant 0.000000e+00 : f32
    %97 = vector.broadcast %cst_47 : f32 to vector<16x128xf32>
    %98 = arith.select %20, %96, %97 : vector<16x128xi1>, vector<16x128xf32>
    %c1_i32_48 = arith.constant 1 : i32
    %99 = tpu.dynamic_rotate %92 by %c1_i32_48 dim 0 : vector<16x128xf32>, i32 -> vector<16x128xf32>
    %cst_49 = arith.constant 0.000000e+00 : f32
    %100 = vector.broadcast %cst_49 : f32 to vector<16x128xf32>
    %101 = arith.select %8, %99, %100 : vector<16x128xi1>, vector<16x128xf32>
    %c15_i32_50 = arith.constant 15 : i32
    %102 = tpu.dynamic_rotate %92 by %c15_i32_50 dim 0 : vector<16x128xf32>, i32 -> vector<16x128xf32>
    %cst_51 = arith.constant 0.000000e+00 : f32
    %103 = vector.broadcast %cst_51 : f32 to vector<16x128xf32>
    %104 = arith.select %12, %102, %103 : vector<16x128xi1>, vector<16x128xf32>
    %105 = arith.maximumf %101, %104 : vector<16x128xf32>
    %106 = arith.maximumf %92, %105 : vector<16x128xf32>
    %107 = arith.maximumf %95, %98 : vector<16x128xf32>
    %108 = arith.maximumf %106, %107 : vector<16x128xf32>
    %c1_i32_52 = arith.constant 1 : i32
    %109 = tpu.dynamic_rotate %95 by %c1_i32_52 dim 0 : vector<16x128xf32>, i32 -> vector<16x128xf32>
    %cst_53 = arith.constant 0.000000e+00 : f32
    %110 = vector.broadcast %cst_53 : f32 to vector<16x128xf32>
    %111 = arith.select %8, %109, %110 : vector<16x128xi1>, vector<16x128xf32>
    %c15_i32_54 = arith.constant 15 : i32
    %112 = tpu.dynamic_rotate %95 by %c15_i32_54 dim 0 : vector<16x128xf32>, i32 -> vector<16x128xf32>
    %cst_55 = arith.constant 0.000000e+00 : f32
    %113 = vector.broadcast %cst_55 : f32 to vector<16x128xf32>
    %114 = arith.select %12, %112, %113 : vector<16x128xi1>, vector<16x128xf32>
    %c1_i32_56 = arith.constant 1 : i32
    %115 = tpu.dynamic_rotate %98 by %c1_i32_56 dim 0 : vector<16x128xf32>, i32 -> vector<16x128xf32>
    %cst_57 = arith.constant 0.000000e+00 : f32
    %116 = vector.broadcast %cst_57 : f32 to vector<16x128xf32>
    %117 = arith.select %8, %115, %116 : vector<16x128xi1>, vector<16x128xf32>
    %c15_i32_58 = arith.constant 15 : i32
    %118 = tpu.dynamic_rotate %98 by %c15_i32_58 dim 0 : vector<16x128xf32>, i32 -> vector<16x128xf32>
    %cst_59 = arith.constant 0.000000e+00 : f32
    %119 = vector.broadcast %cst_59 : f32 to vector<16x128xf32>
    %120 = arith.select %12, %118, %119 : vector<16x128xi1>, vector<16x128xf32>
    %121 = arith.maximumf %111, %114 : vector<16x128xf32>
    %122 = arith.maximumf %117, %120 : vector<16x128xf32>
    %123 = arith.maximumf %121, %122 : vector<16x128xf32>
    %cst_60 = arith.constant 4.5399931E-5 : f32
    %124 = vector.broadcast %cst_60 : f32 to vector<16x128xf32>
    %125 = arith.mulf %124, %123 : vector<16x128xf32>
    %126 = arith.maximumf %108, %125 : vector<16x128xf32>
    %127 = arith.mulf %1, %126 : vector<16x128xf32>
    %128 = arith.maximumf %127, %92 : vector<16x128xf32>
    %c3_i32 = arith.constant 3 : i32
    %c1_i32_61 = arith.constant 1 : i32
    %129 = tpu.dynamic_rotate %128 by %c1_i32_61 dim 1 : vector<16x128xf32>, i32 -> vector<16x128xf32>
    %cst_62 = arith.constant 0.000000e+00 : f32
    %130 = vector.broadcast %cst_62 : f32 to vector<16x128xf32>
    %131 = arith.select %16, %129, %130 : vector<16x128xi1>, vector<16x128xf32>
    %c127_i32_63 = arith.constant 127 : i32
    %132 = tpu.dynamic_rotate %128 by %c127_i32_63 dim 1 : vector<16x128xf32>, i32 -> vector<16x128xf32>
    %cst_64 = arith.constant 0.000000e+00 : f32
    %133 = vector.broadcast %cst_64 : f32 to vector<16x128xf32>
    %134 = arith.select %20, %132, %133 : vector<16x128xi1>, vector<16x128xf32>
    %c1_i32_65 = arith.constant 1 : i32
    %135 = tpu.dynamic_rotate %128 by %c1_i32_65 dim 0 : vector<16x128xf32>, i32 -> vector<16x128xf32>
    %cst_66 = arith.constant 0.000000e+00 : f32
    %136 = vector.broadcast %cst_66 : f32 to vector<16x128xf32>
    %137 = arith.select %8, %135, %136 : vector<16x128xi1>, vector<16x128xf32>
    %c15_i32_67 = arith.constant 15 : i32
    %138 = tpu.dynamic_rotate %128 by %c15_i32_67 dim 0 : vector<16x128xf32>, i32 -> vector<16x128xf32>
    %cst_68 = arith.constant 0.000000e+00 : f32
    %139 = vector.broadcast %cst_68 : f32 to vector<16x128xf32>
    %140 = arith.select %12, %138, %139 : vector<16x128xi1>, vector<16x128xf32>
    %141 = arith.maximumf %137, %140 : vector<16x128xf32>
    %142 = arith.maximumf %128, %141 : vector<16x128xf32>
    %143 = arith.maximumf %131, %134 : vector<16x128xf32>
    %144 = arith.maximumf %142, %143 : vector<16x128xf32>
    %c1_i32_69 = arith.constant 1 : i32
    %145 = tpu.dynamic_rotate %131 by %c1_i32_69 dim 0 : vector<16x128xf32>, i32 -> vector<16x128xf32>
    %cst_70 = arith.constant 0.000000e+00 : f32
    %146 = vector.broadcast %cst_70 : f32 to vector<16x128xf32>
    %147 = arith.select %8, %145, %146 : vector<16x128xi1>, vector<16x128xf32>
    %c15_i32_71 = arith.constant 15 : i32
    %148 = tpu.dynamic_rotate %131 by %c15_i32_71 dim 0 : vector<16x128xf32>, i32 -> vector<16x128xf32>
    %cst_72 = arith.constant 0.000000e+00 : f32
    %149 = vector.broadcast %cst_72 : f32 to vector<16x128xf32>
    %150 = arith.select %12, %148, %149 : vector<16x128xi1>, vector<16x128xf32>
    %c1_i32_73 = arith.constant 1 : i32
    %151 = tpu.dynamic_rotate %134 by %c1_i32_73 dim 0 : vector<16x128xf32>, i32 -> vector<16x128xf32>
    %cst_74 = arith.constant 0.000000e+00 : f32
    %152 = vector.broadcast %cst_74 : f32 to vector<16x128xf32>
    %153 = arith.select %8, %151, %152 : vector<16x128xi1>, vector<16x128xf32>
    %c15_i32_75 = arith.constant 15 : i32
    %154 = tpu.dynamic_rotate %134 by %c15_i32_75 dim 0 : vector<16x128xf32>, i32 -> vector<16x128xf32>
    %cst_76 = arith.constant 0.000000e+00 : f32
    %155 = vector.broadcast %cst_76 : f32 to vector<16x128xf32>
    %156 = arith.select %12, %154, %155 : vector<16x128xi1>, vector<16x128xf32>
    %157 = arith.maximumf %147, %150 : vector<16x128xf32>
    %158 = arith.maximumf %153, %156 : vector<16x128xf32>
    %159 = arith.maximumf %157, %158 : vector<16x128xf32>
    %cst_77 = arith.constant 4.5399931E-5 : f32
    %160 = vector.broadcast %cst_77 : f32 to vector<16x128xf32>
    %161 = arith.mulf %160, %159 : vector<16x128xf32>
    %162 = arith.maximumf %144, %161 : vector<16x128xf32>
    %163 = arith.mulf %1, %162 : vector<16x128xf32>
    %164 = arith.maximumf %163, %128 : vector<16x128xf32>
    %c4_i32_78 = arith.constant 4 : i32
    %c1_i32_79 = arith.constant 1 : i32
    %165 = tpu.dynamic_rotate %164 by %c1_i32_79 dim 1 : vector<16x128xf32>, i32 -> vector<16x128xf32>
    %cst_80 = arith.constant 0.000000e+00 : f32
    %166 = vector.broadcast %cst_80 : f32 to vector<16x128xf32>
    %167 = arith.select %16, %165, %166 : vector<16x128xi1>, vector<16x128xf32>
    %c127_i32_81 = arith.constant 127 : i32
    %168 = tpu.dynamic_rotate %164 by %c127_i32_81 dim 1 : vector<16x128xf32>, i32 -> vector<16x128xf32>
    %cst_82 = arith.constant 0.000000e+00 : f32
    %169 = vector.broadcast %cst_82 : f32 to vector<16x128xf32>
    %170 = arith.select %20, %168, %169 : vector<16x128xi1>, vector<16x128xf32>
    %c1_i32_83 = arith.constant 1 : i32
    %171 = tpu.dynamic_rotate %164 by %c1_i32_83 dim 0 : vector<16x128xf32>, i32 -> vector<16x128xf32>
    %cst_84 = arith.constant 0.000000e+00 : f32
    %172 = vector.broadcast %cst_84 : f32 to vector<16x128xf32>
    %173 = arith.select %8, %171, %172 : vector<16x128xi1>, vector<16x128xf32>
    %c15_i32_85 = arith.constant 15 : i32
    %174 = tpu.dynamic_rotate %164 by %c15_i32_85 dim 0 : vector<16x128xf32>, i32 -> vector<16x128xf32>
    %cst_86 = arith.constant 0.000000e+00 : f32
    %175 = vector.broadcast %cst_86 : f32 to vector<16x128xf32>
    %176 = arith.select %12, %174, %175 : vector<16x128xi1>, vector<16x128xf32>
    %177 = arith.maximumf %173, %176 : vector<16x128xf32>
    %178 = arith.maximumf %164, %177 : vector<16x128xf32>
    %179 = arith.maximumf %167, %170 : vector<16x128xf32>
    %180 = arith.maximumf %178, %179 : vector<16x128xf32>
    %c1_i32_87 = arith.constant 1 : i32
    %181 = tpu.dynamic_rotate %167 by %c1_i32_87 dim 0 : vector<16x128xf32>, i32 -> vector<16x128xf32>
    %cst_88 = arith.constant 0.000000e+00 : f32
    %182 = vector.broadcast %cst_88 : f32 to vector<16x128xf32>
    %183 = arith.select %8, %181, %182 : vector<16x128xi1>, vector<16x128xf32>
    %c15_i32_89 = arith.constant 15 : i32
    %184 = tpu.dynamic_rotate %167 by %c15_i32_89 dim 0 : vector<16x128xf32>, i32 -> vector<16x128xf32>
    %cst_90 = arith.constant 0.000000e+00 : f32
    %185 = vector.broadcast %cst_90 : f32 to vector<16x128xf32>
    %186 = arith.select %12, %184, %185 : vector<16x128xi1>, vector<16x128xf32>
    %c1_i32_91 = arith.constant 1 : i32
    %187 = tpu.dynamic_rotate %170 by %c1_i32_91 dim 0 : vector<16x128xf32>, i32 -> vector<16x128xf32>
    %cst_92 = arith.constant 0.000000e+00 : f32
    %188 = vector.broadcast %cst_92 : f32 to vector<16x128xf32>
    %189 = arith.select %8, %187, %188 : vector<16x128xi1>, vector<16x128xf32>
    %c15_i32_93 = arith.constant 15 : i32
    %190 = tpu.dynamic_rotate %170 by %c15_i32_93 dim 0 : vector<16x128xf32>, i32 -> vector<16x128xf32>
    %cst_94 = arith.constant 0.000000e+00 : f32
    %191 = vector.broadcast %cst_94 : f32 to vector<16x128xf32>
    %192 = arith.select %12, %190, %191 : vector<16x128xi1>, vector<16x128xf32>
    %193 = arith.maximumf %183, %186 : vector<16x128xf32>
    %194 = arith.maximumf %189, %192 : vector<16x128xf32>
    %195 = arith.maximumf %193, %194 : vector<16x128xf32>
    %cst_95 = arith.constant 4.5399931E-5 : f32
    %196 = vector.broadcast %cst_95 : f32 to vector<16x128xf32>
    %197 = arith.mulf %196, %195 : vector<16x128xf32>
    %198 = arith.maximumf %180, %197 : vector<16x128xf32>
    %199 = arith.mulf %1, %198 : vector<16x128xf32>
    %200 = arith.maximumf %199, %164 : vector<16x128xf32>
    %c5_i32 = arith.constant 5 : i32
    %c1_i32_96 = arith.constant 1 : i32
    %201 = tpu.dynamic_rotate %200 by %c1_i32_96 dim 1 : vector<16x128xf32>, i32 -> vector<16x128xf32>
    %cst_97 = arith.constant 0.000000e+00 : f32
    %202 = vector.broadcast %cst_97 : f32 to vector<16x128xf32>
    %203 = arith.select %16, %201, %202 : vector<16x128xi1>, vector<16x128xf32>
    %c127_i32_98 = arith.constant 127 : i32
    %204 = tpu.dynamic_rotate %200 by %c127_i32_98 dim 1 : vector<16x128xf32>, i32 -> vector<16x128xf32>
    %cst_99 = arith.constant 0.000000e+00 : f32
    %205 = vector.broadcast %cst_99 : f32 to vector<16x128xf32>
    %206 = arith.select %20, %204, %205 : vector<16x128xi1>, vector<16x128xf32>
    %c1_i32_100 = arith.constant 1 : i32
    %207 = tpu.dynamic_rotate %200 by %c1_i32_100 dim 0 : vector<16x128xf32>, i32 -> vector<16x128xf32>
    %cst_101 = arith.constant 0.000000e+00 : f32
    %208 = vector.broadcast %cst_101 : f32 to vector<16x128xf32>
    %209 = arith.select %8, %207, %208 : vector<16x128xi1>, vector<16x128xf32>
    %c15_i32_102 = arith.constant 15 : i32
    %210 = tpu.dynamic_rotate %200 by %c15_i32_102 dim 0 : vector<16x128xf32>, i32 -> vector<16x128xf32>
    %cst_103 = arith.constant 0.000000e+00 : f32
    %211 = vector.broadcast %cst_103 : f32 to vector<16x128xf32>
    %212 = arith.select %12, %210, %211 : vector<16x128xi1>, vector<16x128xf32>
    %213 = arith.maximumf %209, %212 : vector<16x128xf32>
    %214 = arith.maximumf %200, %213 : vector<16x128xf32>
    %215 = arith.maximumf %203, %206 : vector<16x128xf32>
    %216 = arith.maximumf %214, %215 : vector<16x128xf32>
    %c1_i32_104 = arith.constant 1 : i32
    %217 = tpu.dynamic_rotate %203 by %c1_i32_104 dim 0 : vector<16x128xf32>, i32 -> vector<16x128xf32>
    %cst_105 = arith.constant 0.000000e+00 : f32
    %218 = vector.broadcast %cst_105 : f32 to vector<16x128xf32>
    %219 = arith.select %8, %217, %218 : vector<16x128xi1>, vector<16x128xf32>
    %c15_i32_106 = arith.constant 15 : i32
    %220 = tpu.dynamic_rotate %203 by %c15_i32_106 dim 0 : vector<16x128xf32>, i32 -> vector<16x128xf32>
    %cst_107 = arith.constant 0.000000e+00 : f32
    %221 = vector.broadcast %cst_107 : f32 to vector<16x128xf32>
    %222 = arith.select %12, %220, %221 : vector<16x128xi1>, vector<16x128xf32>
    %c1_i32_108 = arith.constant 1 : i32
    %223 = tpu.dynamic_rotate %206 by %c1_i32_108 dim 0 : vector<16x128xf32>, i32 -> vector<16x128xf32>
    %cst_109 = arith.constant 0.000000e+00 : f32
    %224 = vector.broadcast %cst_109 : f32 to vector<16x128xf32>
    %225 = arith.select %8, %223, %224 : vector<16x128xi1>, vector<16x128xf32>
    %c15_i32_110 = arith.constant 15 : i32
    %226 = tpu.dynamic_rotate %206 by %c15_i32_110 dim 0 : vector<16x128xf32>, i32 -> vector<16x128xf32>
    %cst_111 = arith.constant 0.000000e+00 : f32
    %227 = vector.broadcast %cst_111 : f32 to vector<16x128xf32>
    %228 = arith.select %12, %226, %227 : vector<16x128xi1>, vector<16x128xf32>
    %229 = arith.maximumf %219, %222 : vector<16x128xf32>
    %230 = arith.maximumf %225, %228 : vector<16x128xf32>
    %231 = arith.maximumf %229, %230 : vector<16x128xf32>
    %cst_112 = arith.constant 4.5399931E-5 : f32
    %232 = vector.broadcast %cst_112 : f32 to vector<16x128xf32>
    %233 = arith.mulf %232, %231 : vector<16x128xf32>
    %234 = arith.maximumf %216, %233 : vector<16x128xf32>
    %235 = arith.mulf %1, %234 : vector<16x128xf32>
    %236 = arith.maximumf %235, %200 : vector<16x128xf32>
    %c6_i32 = arith.constant 6 : i32
    %c1_i32_113 = arith.constant 1 : i32
    %237 = tpu.dynamic_rotate %236 by %c1_i32_113 dim 1 : vector<16x128xf32>, i32 -> vector<16x128xf32>
    %cst_114 = arith.constant 0.000000e+00 : f32
    %238 = vector.broadcast %cst_114 : f32 to vector<16x128xf32>
    %239 = arith.select %16, %237, %238 : vector<16x128xi1>, vector<16x128xf32>
    %c127_i32_115 = arith.constant 127 : i32
    %240 = tpu.dynamic_rotate %236 by %c127_i32_115 dim 1 : vector<16x128xf32>, i32 -> vector<16x128xf32>
    %cst_116 = arith.constant 0.000000e+00 : f32
    %241 = vector.broadcast %cst_116 : f32 to vector<16x128xf32>
    %242 = arith.select %20, %240, %241 : vector<16x128xi1>, vector<16x128xf32>
    %c1_i32_117 = arith.constant 1 : i32
    %243 = tpu.dynamic_rotate %236 by %c1_i32_117 dim 0 : vector<16x128xf32>, i32 -> vector<16x128xf32>
    %cst_118 = arith.constant 0.000000e+00 : f32
    %244 = vector.broadcast %cst_118 : f32 to vector<16x128xf32>
    %245 = arith.select %8, %243, %244 : vector<16x128xi1>, vector<16x128xf32>
    %c15_i32_119 = arith.constant 15 : i32
    %246 = tpu.dynamic_rotate %236 by %c15_i32_119 dim 0 : vector<16x128xf32>, i32 -> vector<16x128xf32>
    %cst_120 = arith.constant 0.000000e+00 : f32
    %247 = vector.broadcast %cst_120 : f32 to vector<16x128xf32>
    %248 = arith.select %12, %246, %247 : vector<16x128xi1>, vector<16x128xf32>
    %249 = arith.maximumf %245, %248 : vector<16x128xf32>
    %250 = arith.maximumf %236, %249 : vector<16x128xf32>
    %251 = arith.maximumf %239, %242 : vector<16x128xf32>
    %252 = arith.maximumf %250, %251 : vector<16x128xf32>
    %c1_i32_121 = arith.constant 1 : i32
    %253 = tpu.dynamic_rotate %239 by %c1_i32_121 dim 0 : vector<16x128xf32>, i32 -> vector<16x128xf32>
    %cst_122 = arith.constant 0.000000e+00 : f32
    %254 = vector.broadcast %cst_122 : f32 to vector<16x128xf32>
    %255 = arith.select %8, %253, %254 : vector<16x128xi1>, vector<16x128xf32>
    %c15_i32_123 = arith.constant 15 : i32
    %256 = tpu.dynamic_rotate %239 by %c15_i32_123 dim 0 : vector<16x128xf32>, i32 -> vector<16x128xf32>
    %cst_124 = arith.constant 0.000000e+00 : f32
    %257 = vector.broadcast %cst_124 : f32 to vector<16x128xf32>
    %258 = arith.select %12, %256, %257 : vector<16x128xi1>, vector<16x128xf32>
    %c1_i32_125 = arith.constant 1 : i32
    %259 = tpu.dynamic_rotate %242 by %c1_i32_125 dim 0 : vector<16x128xf32>, i32 -> vector<16x128xf32>
    %cst_126 = arith.constant 0.000000e+00 : f32
    %260 = vector.broadcast %cst_126 : f32 to vector<16x128xf32>
    %261 = arith.select %8, %259, %260 : vector<16x128xi1>, vector<16x128xf32>
    %c15_i32_127 = arith.constant 15 : i32
    %262 = tpu.dynamic_rotate %242 by %c15_i32_127 dim 0 : vector<16x128xf32>, i32 -> vector<16x128xf32>
    %cst_128 = arith.constant 0.000000e+00 : f32
    %263 = vector.broadcast %cst_128 : f32 to vector<16x128xf32>
    %264 = arith.select %12, %262, %263 : vector<16x128xi1>, vector<16x128xf32>
    %265 = arith.maximumf %255, %258 : vector<16x128xf32>
    %266 = arith.maximumf %261, %264 : vector<16x128xf32>
    %267 = arith.maximumf %265, %266 : vector<16x128xf32>
    %cst_129 = arith.constant 4.5399931E-5 : f32
    %268 = vector.broadcast %cst_129 : f32 to vector<16x128xf32>
    %269 = arith.mulf %268, %267 : vector<16x128xf32>
    %270 = arith.maximumf %252, %269 : vector<16x128xf32>
    %271 = arith.mulf %1, %270 : vector<16x128xf32>
    %272 = arith.maximumf %271, %236 : vector<16x128xf32>
    %c7_i32 = arith.constant 7 : i32
    %c1_i32_130 = arith.constant 1 : i32
    %273 = tpu.dynamic_rotate %272 by %c1_i32_130 dim 1 : vector<16x128xf32>, i32 -> vector<16x128xf32>
    %cst_131 = arith.constant 0.000000e+00 : f32
    %274 = vector.broadcast %cst_131 : f32 to vector<16x128xf32>
    %275 = arith.select %16, %273, %274 : vector<16x128xi1>, vector<16x128xf32>
    %c127_i32_132 = arith.constant 127 : i32
    %276 = tpu.dynamic_rotate %272 by %c127_i32_132 dim 1 : vector<16x128xf32>, i32 -> vector<16x128xf32>
    %cst_133 = arith.constant 0.000000e+00 : f32
    %277 = vector.broadcast %cst_133 : f32 to vector<16x128xf32>
    %278 = arith.select %20, %276, %277 : vector<16x128xi1>, vector<16x128xf32>
    %c1_i32_134 = arith.constant 1 : i32
    %279 = tpu.dynamic_rotate %272 by %c1_i32_134 dim 0 : vector<16x128xf32>, i32 -> vector<16x128xf32>
    %cst_135 = arith.constant 0.000000e+00 : f32
    %280 = vector.broadcast %cst_135 : f32 to vector<16x128xf32>
    %281 = arith.select %8, %279, %280 : vector<16x128xi1>, vector<16x128xf32>
    %c15_i32_136 = arith.constant 15 : i32
    %282 = tpu.dynamic_rotate %272 by %c15_i32_136 dim 0 : vector<16x128xf32>, i32 -> vector<16x128xf32>
    %cst_137 = arith.constant 0.000000e+00 : f32
    %283 = vector.broadcast %cst_137 : f32 to vector<16x128xf32>
    %284 = arith.select %12, %282, %283 : vector<16x128xi1>, vector<16x128xf32>
    %285 = arith.maximumf %281, %284 : vector<16x128xf32>
    %286 = arith.maximumf %272, %285 : vector<16x128xf32>
    %287 = arith.maximumf %275, %278 : vector<16x128xf32>
    %288 = arith.maximumf %286, %287 : vector<16x128xf32>
    %c1_i32_138 = arith.constant 1 : i32
    %289 = tpu.dynamic_rotate %275 by %c1_i32_138 dim 0 : vector<16x128xf32>, i32 -> vector<16x128xf32>
    %cst_139 = arith.constant 0.000000e+00 : f32
    %290 = vector.broadcast %cst_139 : f32 to vector<16x128xf32>
    %291 = arith.select %8, %289, %290 : vector<16x128xi1>, vector<16x128xf32>
    %c15_i32_140 = arith.constant 15 : i32
    %292 = tpu.dynamic_rotate %275 by %c15_i32_140 dim 0 : vector<16x128xf32>, i32 -> vector<16x128xf32>
    %cst_141 = arith.constant 0.000000e+00 : f32
    %293 = vector.broadcast %cst_141 : f32 to vector<16x128xf32>
    %294 = arith.select %12, %292, %293 : vector<16x128xi1>, vector<16x128xf32>
    %c1_i32_142 = arith.constant 1 : i32
    %295 = tpu.dynamic_rotate %278 by %c1_i32_142 dim 0 : vector<16x128xf32>, i32 -> vector<16x128xf32>
    %cst_143 = arith.constant 0.000000e+00 : f32
    %296 = vector.broadcast %cst_143 : f32 to vector<16x128xf32>
    %297 = arith.select %8, %295, %296 : vector<16x128xi1>, vector<16x128xf32>
    %c15_i32_144 = arith.constant 15 : i32
    %298 = tpu.dynamic_rotate %278 by %c15_i32_144 dim 0 : vector<16x128xf32>, i32 -> vector<16x128xf32>
    %cst_145 = arith.constant 0.000000e+00 : f32
    %299 = vector.broadcast %cst_145 : f32 to vector<16x128xf32>
    %300 = arith.select %12, %298, %299 : vector<16x128xi1>, vector<16x128xf32>
    %301 = arith.maximumf %291, %294 : vector<16x128xf32>
    %302 = arith.maximumf %297, %300 : vector<16x128xf32>
    %303 = arith.maximumf %301, %302 : vector<16x128xf32>
    %cst_146 = arith.constant 4.5399931E-5 : f32
    %304 = vector.broadcast %cst_146 : f32 to vector<16x128xf32>
    %305 = arith.mulf %304, %303 : vector<16x128xf32>
    %306 = arith.maximumf %288, %305 : vector<16x128xf32>
    %307 = arith.mulf %1, %306 : vector<16x128xf32>
    %308 = arith.maximumf %307, %272 : vector<16x128xf32>
    %c8_i32_147 = arith.constant 8 : i32
    %c1_i32_148 = arith.constant 1 : i32
    %309 = tpu.dynamic_rotate %308 by %c1_i32_148 dim 1 : vector<16x128xf32>, i32 -> vector<16x128xf32>
    %cst_149 = arith.constant 0.000000e+00 : f32
    %310 = vector.broadcast %cst_149 : f32 to vector<16x128xf32>
    %311 = arith.select %16, %309, %310 : vector<16x128xi1>, vector<16x128xf32>
    %c127_i32_150 = arith.constant 127 : i32
    %312 = tpu.dynamic_rotate %308 by %c127_i32_150 dim 1 : vector<16x128xf32>, i32 -> vector<16x128xf32>
    %cst_151 = arith.constant 0.000000e+00 : f32
    %313 = vector.broadcast %cst_151 : f32 to vector<16x128xf32>
    %314 = arith.select %20, %312, %313 : vector<16x128xi1>, vector<16x128xf32>
    %c1_i32_152 = arith.constant 1 : i32
    %315 = tpu.dynamic_rotate %308 by %c1_i32_152 dim 0 : vector<16x128xf32>, i32 -> vector<16x128xf32>
    %cst_153 = arith.constant 0.000000e+00 : f32
    %316 = vector.broadcast %cst_153 : f32 to vector<16x128xf32>
    %317 = arith.select %8, %315, %316 : vector<16x128xi1>, vector<16x128xf32>
    %c15_i32_154 = arith.constant 15 : i32
    %318 = tpu.dynamic_rotate %308 by %c15_i32_154 dim 0 : vector<16x128xf32>, i32 -> vector<16x128xf32>
    %cst_155 = arith.constant 0.000000e+00 : f32
    %319 = vector.broadcast %cst_155 : f32 to vector<16x128xf32>
    %320 = arith.select %12, %318, %319 : vector<16x128xi1>, vector<16x128xf32>
    %321 = arith.maximumf %317, %320 : vector<16x128xf32>
    %322 = arith.maximumf %308, %321 : vector<16x128xf32>
    %323 = arith.maximumf %311, %314 : vector<16x128xf32>
    %324 = arith.maximumf %322, %323 : vector<16x128xf32>
    %c1_i32_156 = arith.constant 1 : i32
    %325 = tpu.dynamic_rotate %311 by %c1_i32_156 dim 0 : vector<16x128xf32>, i32 -> vector<16x128xf32>
    %cst_157 = arith.constant 0.000000e+00 : f32
    %326 = vector.broadcast %cst_157 : f32 to vector<16x128xf32>
    %327 = arith.select %8, %325, %326 : vector<16x128xi1>, vector<16x128xf32>
    %c15_i32_158 = arith.constant 15 : i32
    %328 = tpu.dynamic_rotate %311 by %c15_i32_158 dim 0 : vector<16x128xf32>, i32 -> vector<16x128xf32>
    %cst_159 = arith.constant 0.000000e+00 : f32
    %329 = vector.broadcast %cst_159 : f32 to vector<16x128xf32>
    %330 = arith.select %12, %328, %329 : vector<16x128xi1>, vector<16x128xf32>
    %c1_i32_160 = arith.constant 1 : i32
    %331 = tpu.dynamic_rotate %314 by %c1_i32_160 dim 0 : vector<16x128xf32>, i32 -> vector<16x128xf32>
    %cst_161 = arith.constant 0.000000e+00 : f32
    %332 = vector.broadcast %cst_161 : f32 to vector<16x128xf32>
    %333 = arith.select %8, %331, %332 : vector<16x128xi1>, vector<16x128xf32>
    %c15_i32_162 = arith.constant 15 : i32
    %334 = tpu.dynamic_rotate %314 by %c15_i32_162 dim 0 : vector<16x128xf32>, i32 -> vector<16x128xf32>
    %cst_163 = arith.constant 0.000000e+00 : f32
    %335 = vector.broadcast %cst_163 : f32 to vector<16x128xf32>
    %336 = arith.select %12, %334, %335 : vector<16x128xi1>, vector<16x128xf32>
    %337 = arith.maximumf %327, %330 : vector<16x128xf32>
    %338 = arith.maximumf %333, %336 : vector<16x128xf32>
    %339 = arith.maximumf %337, %338 : vector<16x128xf32>
    %cst_164 = arith.constant 4.5399931E-5 : f32
    %340 = vector.broadcast %cst_164 : f32 to vector<16x128xf32>
    %341 = arith.mulf %340, %339 : vector<16x128xf32>
    %342 = arith.maximumf %324, %341 : vector<16x128xf32>
    %343 = arith.mulf %1, %342 : vector<16x128xf32>
    %344 = arith.maximumf %343, %308 : vector<16x128xf32>
    %c9_i32 = arith.constant 9 : i32
    %c1_i32_165 = arith.constant 1 : i32
    %345 = tpu.dynamic_rotate %344 by %c1_i32_165 dim 1 : vector<16x128xf32>, i32 -> vector<16x128xf32>
    %cst_166 = arith.constant 0.000000e+00 : f32
    %346 = vector.broadcast %cst_166 : f32 to vector<16x128xf32>
    %347 = arith.select %16, %345, %346 : vector<16x128xi1>, vector<16x128xf32>
    %c127_i32_167 = arith.constant 127 : i32
    %348 = tpu.dynamic_rotate %344 by %c127_i32_167 dim 1 : vector<16x128xf32>, i32 -> vector<16x128xf32>
    %cst_168 = arith.constant 0.000000e+00 : f32
    %349 = vector.broadcast %cst_168 : f32 to vector<16x128xf32>
    %350 = arith.select %20, %348, %349 : vector<16x128xi1>, vector<16x128xf32>
    %c1_i32_169 = arith.constant 1 : i32
    %351 = tpu.dynamic_rotate %344 by %c1_i32_169 dim 0 : vector<16x128xf32>, i32 -> vector<16x128xf32>
    %cst_170 = arith.constant 0.000000e+00 : f32
    %352 = vector.broadcast %cst_170 : f32 to vector<16x128xf32>
    %353 = arith.select %8, %351, %352 : vector<16x128xi1>, vector<16x128xf32>
    %c15_i32_171 = arith.constant 15 : i32
    %354 = tpu.dynamic_rotate %344 by %c15_i32_171 dim 0 : vector<16x128xf32>, i32 -> vector<16x128xf32>
    %cst_172 = arith.constant 0.000000e+00 : f32
    %355 = vector.broadcast %cst_172 : f32 to vector<16x128xf32>
    %356 = arith.select %12, %354, %355 : vector<16x128xi1>, vector<16x128xf32>
    %357 = arith.maximumf %353, %356 : vector<16x128xf32>
    %358 = arith.maximumf %344, %357 : vector<16x128xf32>
    %359 = arith.maximumf %347, %350 : vector<16x128xf32>
    %360 = arith.maximumf %358, %359 : vector<16x128xf32>
    %c1_i32_173 = arith.constant 1 : i32
    %361 = tpu.dynamic_rotate %347 by %c1_i32_173 dim 0 : vector<16x128xf32>, i32 -> vector<16x128xf32>
    %cst_174 = arith.constant 0.000000e+00 : f32
    %362 = vector.broadcast %cst_174 : f32 to vector<16x128xf32>
    %363 = arith.select %8, %361, %362 : vector<16x128xi1>, vector<16x128xf32>
    %c15_i32_175 = arith.constant 15 : i32
    %364 = tpu.dynamic_rotate %347 by %c15_i32_175 dim 0 : vector<16x128xf32>, i32 -> vector<16x128xf32>
    %cst_176 = arith.constant 0.000000e+00 : f32
    %365 = vector.broadcast %cst_176 : f32 to vector<16x128xf32>
    %366 = arith.select %12, %364, %365 : vector<16x128xi1>, vector<16x128xf32>
    %c1_i32_177 = arith.constant 1 : i32
    %367 = tpu.dynamic_rotate %350 by %c1_i32_177 dim 0 : vector<16x128xf32>, i32 -> vector<16x128xf32>
    %cst_178 = arith.constant 0.000000e+00 : f32
    %368 = vector.broadcast %cst_178 : f32 to vector<16x128xf32>
    %369 = arith.select %8, %367, %368 : vector<16x128xi1>, vector<16x128xf32>
    %c15_i32_179 = arith.constant 15 : i32
    %370 = tpu.dynamic_rotate %350 by %c15_i32_179 dim 0 : vector<16x128xf32>, i32 -> vector<16x128xf32>
    %cst_180 = arith.constant 0.000000e+00 : f32
    %371 = vector.broadcast %cst_180 : f32 to vector<16x128xf32>
    %372 = arith.select %12, %370, %371 : vector<16x128xi1>, vector<16x128xf32>
    %373 = arith.maximumf %363, %366 : vector<16x128xf32>
    %374 = arith.maximumf %369, %372 : vector<16x128xf32>
    %375 = arith.maximumf %373, %374 : vector<16x128xf32>
    %cst_181 = arith.constant 4.5399931E-5 : f32
    %376 = vector.broadcast %cst_181 : f32 to vector<16x128xf32>
    %377 = arith.mulf %376, %375 : vector<16x128xf32>
    %378 = arith.maximumf %360, %377 : vector<16x128xf32>
    %379 = arith.mulf %1, %378 : vector<16x128xf32>
    %380 = arith.maximumf %379, %344 : vector<16x128xf32>
    %381 = arith.subf %380, %3 : vector<16x128xf32>
    %cst_182 = arith.constant 0.000000e+00 : f32
    %382 = vector.broadcast %cst_182 : f32 to vector<16x128xf32>
    %383 = arith.maximumf %381, %382 : vector<16x128xf32>
    %c0_183 = arith.constant 0 : index
    %c0_184 = arith.constant 0 : index
    %c0_185 = arith.constant 0 : index
    %384 = vector.load %arg4[%c0_183, %c0_184, %c0_185] : memref<1x16x128xf32, #tpu.memory_space<vmem>>, vector<1x16x128xf32>
    %385 = vector.shape_cast %384 : vector<1x16x128xf32> to vector<16x128xf32>
    %386 = vector.shape_cast %383 : vector<16x128xf32> to vector<1x16x128xf32>
    tpu.vector_store %arg4[%c0_183, %c0_184, %c0_185], %386 {strides = array<i32>} : memref<1x16x128xf32, #tpu.memory_space<vmem>>, vector<1x16x128xf32>,
    return
  }
  func.func @transform_0(%arg0: i32) -> (i32, i32) {
    %c0_i32 = arith.constant 0 : i32
    %c0_i32_0 = arith.constant 0 : i32
    %c0_i32_1 = arith.constant 0 : i32
    return %c0_i32, %c0_i32_0 : i32, i32
  }
  func.func @transform_1(%arg0: i32) -> (i32, i32, i32) {
    %c0_i32 = arith.constant 0 : i32
    %c0_i32_0 = arith.constant 0 : i32
    %c0_i32_1 = arith.constant 0 : i32
    return %arg0, %c0_i32, %c0_i32_0 : i32, i32, i32
  }
  func.func @transform_2(%arg0: i32) -> (i32, i32, i32) {
    %c0_i32 = arith.constant 0 : i32
    %c0_i32_0 = arith.constant 0 : i32
    %c0_i32_1 = arith.constant 0 : i32
    return %arg0, %c0_i32, %c0_i32_0 : i32, i32, i32
  }
  func.func @transform_3(%arg0: i32) -> (i32, i32, i32) {
    %c0_i32 = arith.constant 0 : i32
    %c0_i32_0 = arith.constant 0 : i32
    %c0_i32_1 = arith.constant 0 : i32
    return %arg0, %c0_i32, %c0_i32_0 : i32, i32, i32
  }
}

</mosaic_0001>

<llo_original>
// kernel: mvprop2d_forward.1
$region0: #{mvprop2d_forward.1}
  #allocation0 [shape = 'u32[]', space=smem, size = 0x4, offset = 0x4, fixed_abs, tag = 'smem constant byte address 0x4 - core index']
  #allocation1 [shape = 'u32[72,128]{1,0:T(1,128)}', space=vmem, size = 0x9000, scoped, tag = 'internal scratch']
  %s0 = inlined_call_operand.vmem [shape: s32[16,128], index: 0, kind: input, shape index: {}]
  %s1 = inlined_call_operand.vmem [shape: f32[1,16,128], index: 1, kind: input, shape index: {}]
  %s2 = inlined_call_operand.vmem [shape: f32[1,16,128], index: 2, kind: input, shape index: {}]
  %s3 = inlined_call_operand.vmem [shape: f32[1,16,128], index: 3, kind: output, shape index: {}]
  %s4 = sld [smem:[#allocation0]]
  $region22: #{mvprop2d_forward.1} parent=0
    _
  %s6 = ssub.s32 1, %s4
  %s7 = scalar_select 0, %s6, %s4
  // Predicated region
  $region2: #{mvprop2d_forward.1} parent=0 // pred_check
    _
  $region3: #{mvprop2d_forward.1} parent=0 // pred_check_branch
    %9 = sbr.rel (0) target = $region5
  $region4: #{mvprop2d_forward.1} parent=0 // pred_region
    _
  $region5: #{mvprop2d_forward.1} parent=0 // pred_fallthru
    _
  // Predicated region
  $region6: #{mvprop2d_forward.1} parent=0 // pred_check
    _
  $region7: #{mvprop2d_forward.1} parent=0 // pred_check_branch
    %11 = sbr.rel (0) target = $region9
  $region8: #{mvprop2d_forward.1} parent=0 // pred_region
    _
  $region9: #{mvprop2d_forward.1} parent=0 // pred_fallthru
    _
  // Predicated region
  $region10: #{mvprop2d_forward.1} parent=0 // pred_check
    _
  $region11: #{mvprop2d_forward.1} parent=0 // pred_check_branch
    %13 = sbr.rel (0) target = $region13
  $region12: #{mvprop2d_forward.1} parent=0 // pred_region
    _
  $region13: #{mvprop2d_forward.1} parent=0 // pred_fallthru
    _
  %v14 = vld [vmem:[%s1] sm:$0xff]
  %v15 = vld [vmem:[%s1 + $0x8] sm:$0xff]
  %v16 = vld [vmem:[%s2] sm:$0xff]
  %v17 = vld [vmem:[%s2 + $0x8] sm:$0xff]
  %v18 = vld [vmem:[%s0] sm:$0xff]
  %v19 = vld [vmem:[%s0 + $0x8] sm:$0xff]
  %v20 = vand.u32 %v18, 1
  %v21 = vand.u32 %v19, 1
  %vm22 = vcmp.eq.s32.totalorder %v20, 0
  %vm23 = vcmp.eq.s32.totalorder %v21, 0
  %v24 = vand.u32 %v18, 2
  %v25 = vand.u32 %v19, 2
  %vm26 = vcmp.eq.s32.totalorder %v24, 0
  %vm27 = vcmp.eq.s32.totalorder %v25, 0
  %v28 = vand.u32 %v18, 4
  %v29 = vand.u32 %v19, 4
  %vm30 = vcmp.eq.s32.totalorder %v28, 0
  %vm31 = vcmp.eq.s32.totalorder %v29, 0
  %v32 = vand.u32 %v18, 8
  %v33 = vand.u32 %v19, 8
  %vm34 = vcmp.eq.s32.totalorder %v32, 0
  %vm35 = vcmp.eq.s32.totalorder %v33, 0
  %36 = vrot.lane.b32.xlu0 %v16, 1
  %v37 = vpop.permute.xlu0 %36
  %38 = vrot.lane.b32.xlu0 %v17, 1
  %v39 = vpop.permute.xlu0 %38
  %v40 = vsel %vm30, %v37, 0.0
  %v41 = vsel %vm31, %v39, 0.0
  %42 = vrot.lane.b32.xlu0 %v16, 127
  %v43 = vpop.permute.xlu0 %42
  %44 = vrot.lane.b32.xlu0 %v17, 127
  %v45 = vpop.permute.xlu0 %44
  %v46 = vsel %vm34, %v43, 0.0
  %v47 = vsel %vm35, %v45, 0.0
  %v48 = vrot.slane %v16, 7
  %v49 = vrot.slane %v17, 7
  %v50 = vlaneseq
  %v51 = vshrl.u32 %v50, 7
  %vm52 = vcmp.lt.s32.totalorder %v51, 1
  %v53 = vsel %vm52, %v48, %v49
  %v54 = vsel %vm52, %v49, %v48
  %v55 = vsel %vm22, %v54, 0.0
  %v56 = vsel %vm23, %v53, 0.0
  %v57 = vrot.slane %v16, 1
  %v58 = vrot.slane %v17, 1
  %vm59 = vcmp.lt.s32.totalorder %v51, 7
  %v60 = vsel %vm59, %v57, %v58
  %v61 = vsel %vm59, %v58, %v57
  %v62 = vsel %vm26, %v60, 0.0
  %v63 = vsel %vm27, %v61, 0.0
  %v64 = vmax.f32 %v55, %v62
  %v65 = vmax.f32 %v56, %v63
  %v66 = vmax.f32 %v16, %v64
  %v67 = vmax.f32 %v17, %v65
  %v68 = vmax.f32 %v40, %v46
  %v69 = vmax.f32 %v41, %v47
  %v70 = vmax.f32 %v66, %v68
  %v71 = vmax.f32 %v67, %v69
  %v72 = vrot.slane %v40, 7
  %v73 = vrot.slane %v41, 7
  %v74 = vsel %vm52, %v72, %v73
  %v75 = vsel %vm52, %v73, %v72
  %v76 = vsel %vm22, %v75, 0.0
  %v77 = vsel %vm23, %v74, 0.0
  %v78 = vrot.slane %v40, 1
  %v79 = vrot.slane %v41, 1
  %v80 = vsel %vm59, %v78, %v79
  %v81 = vsel %vm59, %v79, %v78
  %v82 = vsel %vm26, %v80, 0.0
  %v83 = vsel %vm27, %v81, 0.0
  %v84 = vrot.slane %v46, 7
  %v85 = vrot.slane %v47, 7
  %v86 = vsel %vm52, %v84, %v85
  %v87 = vsel %vm52, %v85, %v84
  %v88 = vsel %vm22, %v87, 0.0
  %v89 = vsel %vm23, %v86, 0.0
  %v90 = vrot.slane %v46, 1
  %v91 = vrot.slane %v47, 1
  %v92 = vsel %vm59, %v90, %v91
  %v93 = vsel %vm59, %v91, %v90
  %v94 = vsel %vm26, %v92, 0.0
  %v95 = vsel %vm27, %v93, 0.0
  %v96 = vmax.f32 %v76, %v82
  %v97 = vmax.f32 %v77, %v83
  %v98 = vmax.f32 %v88, %v94
  %v99 = vmax.f32 %v89, %v95
  %v100 = vmax.f32 %v96, %v98
  %v101 = vmax.f32 %v97, %v99
  %v102 = vmul.f32 %v100, 4.539993e-05
  %v103 = vmul.f32 %v101, 4.539993e-05
  %v104 = vmax.f32 %v70, %v102
  %v105 = vmax.f32 %v71, %v103
  %v106 = vmul.f32 %v14, %v104
  %v107 = vmul.f32 %v15, %v105
  %v108 = vmax.f32 %v106, %v16
  %v109 = vmax.f32 %v107, %v17
  %110 = vrot.lane.b32.xlu0 %v108, 1
  %v111 = vpop.permute.xlu0 %110
  %112 = vrot.lane.b32.xlu0 %v109, 1
  %v113 = vpop.permute.xlu0 %112
  %v114 = vsel %vm30, %v111, 0.0
  %v115 = vsel %vm31, %v113, 0.0
  %116 = vrot.lane.b32.xlu0 %v108, 127
  %v117 = vpop.permute.xlu0 %116
  %118 = vrot.lane.b32.xlu0 %v109, 127
  %v119 = vpop.permute.xlu0 %118
  %v120 = vsel %vm34, %v117, 0.0
  %v121 = vsel %vm35, %v119, 0.0
  %v122 = vrot.slane %v108, 7
  %v123 = vrot.slane %v109, 7
  %v124 = vsel %vm52, %v122, %v123
  %v125 = vsel %vm52, %v123, %v122
  %v126 = vsel %vm22, %v125, 0.0
  %v127 = vsel %vm23, %v124, 0.0
  %v128 = vrot.slane %v108, 1
  %v129 = vrot.slane %v109, 1
  %v130 = vsel %vm59, %v128, %v129
  %v131 = vsel %vm59, %v129, %v128
  %v132 = vsel %vm26, %v130, 0.0
  %v133 = vsel %vm27, %v131, 0.0
  %v134 = vmax.f32 %v126, %v132
  %v135 = vmax.f32 %v127, %v133
  %v136 = vmax.f32 %v108, %v134
  %v137 = vmax.f32 %v109, %v135
  %v138 = vmax.f32 %v114, %v120
  %v139 = vmax.f32 %v115, %v121
  %v140 = vmax.f32 %v136, %v138
  %v141 = vmax.f32 %v137, %v139
  %v142 = vrot.slane %v114, 7
  %v143 = vrot.slane %v115, 7
  %v144 = vsel %vm52, %v142, %v143
  %v145 = vsel %vm52, %v143, %v142
  %v146 = vsel %vm22, %v145, 0.0
  %v147 = vsel %vm23, %v144, 0.0
  %v148 = vrot.slane %v114, 1
  %v149 = vrot.slane %v115, 1
  %v150 = vsel %vm59, %v148, %v149
  %v151 = vsel %vm59, %v149, %v148
  %v152 = vsel %vm26, %v150, 0.0
  %v153 = vsel %vm27, %v151, 0.0
  %v154 = vrot.slane %v120, 7
  %v155 = vrot.slane %v121, 7
  %v156 = vsel %vm52, %v154, %v155
  %v157 = vsel %vm52, %v155, %v154
  %v158 = vsel %vm22, %v157, 0.0
  %v159 = vsel %vm23, %v156, 0.0
  %v160 = vrot.slane %v120, 1
  %v161 = vrot.slane %v121, 1
  %v162 = vsel %vm59, %v160, %v161
  %v163 = vsel %vm59, %v161, %v160
  %v164 = vsel %vm26, %v162, 0.0
  %v165 = vsel %vm27, %v163, 0.0
  %v166 = vmax.f32 %v146, %v152
  %v167 = vmax.f32 %v147, %v153
  %v168 = vmax.f32 %v158, %v164
  %v169 = vmax.f32 %v159, %v165
  %v170 = vmax.f32 %v166, %v168
  %v171 = vmax.f32 %v167, %v169
  %v172 = vmul.f32 %v170, 4.539993e-05
  %v173 = vmul.f32 %v171, 4.539993e-05
  %v174 = vmax.f32 %v140, %v172
  %v175 = vmax.f32 %v141, %v173
  %v176 = vmul.f32 %v14, %v174
  %v177 = vmul.f32 %v15, %v175
  %v178 = vmax.f32 %v176, %v108
  %v179 = vmax.f32 %v177, %v109
  %180 = vrot.lane.b32.xlu0 %v178, 1
  %v181 = vpop.permute.xlu0 %180
  %182 = vrot.lane.b32.xlu0 %v179, 1
  %v183 = vpop.permute.xlu0 %182
  %v184 = vsel %vm30, %v181, 0.0
  %v185 = vsel %vm31, %v183, 0.0
  %186 = vrot.lane.b32.xlu0 %v178, 127
  %v187 = vpop.permute.xlu0 %186
  %188 = vrot.lane.b32.xlu0 %v179, 127
  %v189 = vpop.permute.xlu0 %188
  %v190 = vsel %vm34, %v187, 0.0
  %v191 = vsel %vm35, %v189, 0.0
  %v192 = vrot.slane %v178, 7
  %v193 = vrot.slane %v179, 7
  %v194 = vsel %vm52, %v192, %v193
  %v195 = vsel %vm52, %v193, %v192
  %v196 = vsel %vm22, %v195, 0.0
  %v197 = vsel %vm23, %v194, 0.0
  %v198 = vrot.slane %v178, 1
  %v199 = vrot.slane %v179, 1
  %v200 = vsel %vm59, %v198, %v199
  %v201 = vsel %vm59, %v199, %v198
  %v202 = vsel %vm26, %v200, 0.0
  %v203 = vsel %vm27, %v201, 0.0
  %v204 = vmax.f32 %v196, %v202
  %v205 = vmax.f32 %v197, %v203
  %v206 = vmax.f32 %v178, %v204
  %v207 = vmax.f32 %v179, %v205
  %v208 = vmax.f32 %v184, %v190
  %v209 = vmax.f32 %v185, %v191
  %v210 = vmax.f32 %v206, %v208
  %v211 = vmax.f32 %v207, %v209
  %v212 = vrot.slane %v184, 7
  %v213 = vrot.slane %v185, 7
  %v214 = vsel %vm52, %v212, %v213
  %v215 = vsel %vm52, %v213, %v212
  %v216 = vsel %vm22, %v215, 0.0
  %v217 = vsel %vm23, %v214, 0.0
  %v218 = vrot.slane %v184, 1
  %v219 = vrot.slane %v185, 1
  %v220 = vsel %vm59, %v218, %v219
  %v221 = vsel %vm59, %v219, %v218
  %v222 = vsel %vm26, %v220, 0.0
  %v223 = vsel %vm27, %v221, 0.0
  %v224 = vrot.slane %v190, 7
  %v225 = vrot.slane %v191, 7
  %v226 = vsel %vm52, %v224, %v225
  %v227 = vsel %vm52, %v225, %v224
  %v228 = vsel %vm22, %v227, 0.0
  %v229 = vsel %vm23, %v226, 0.0
  %v230 = vrot.slane %v190, 1
  %v231 = vrot.slane %v191, 1
  %v232 = vsel %vm59, %v230, %v231
  %v233 = vsel %vm59, %v231, %v230
  %v234 = vsel %vm26, %v232, 0.0
  %v235 = vsel %vm27, %v233, 0.0
  %v236 = vmax.f32 %v216, %v222
  %v237 = vmax.f32 %v217, %v223
  %v238 = vmax.f32 %v228, %v234
  %v239 = vmax.f32 %v229, %v235
  %v240 = vmax.f32 %v236, %v238
  %v241 = vmax.f32 %v237, %v239
  %v242 = vmul.f32 %v240, 4.539993e-05
  %v243 = vmul.f32 %v241, 4.539993e-05
  %v244 = vmax.f32 %v210, %v242
  %v245 = vmax.f32 %v211, %v243
  %v246 = vmul.f32 %v14, %v244
  %v247 = vmul.f32 %v15, %v245
  %v248 = vmax.f32 %v246, %v178
  %v249 = vmax.f32 %v247, %v179
  %250 = vrot.lane.b32.xlu0 %v248, 1
  %v251 = vpop.permute.xlu0 %250
  %252 = vrot.lane.b32.xlu0 %v249, 1
  %v253 = vpop.permute.xlu0 %252
  %v254 = vsel %vm30, %v251, 0.0
  %v255 = vsel %vm31, %v253, 0.0
  %256 = vrot.lane.b32.xlu0 %v248, 127
  %v257 = vpop.permute.xlu0 %256
  %258 = vrot.lane.b32.xlu0 %v249, 127
  %v259 = vpop.permute.xlu0 %258
  %v260 = vsel %vm34, %v257, 0.0
  %v261 = vsel %vm35, %v259, 0.0
  %v262 = vrot.slane %v248, 7
  %v263 = vrot.slane %v249, 7
  %v264 = vsel %vm52, %v262, %v263
  %v265 = vsel %vm52, %v263, %v262
  %v266 = vsel %vm22, %v265, 0.0
  %v267 = vsel %vm23, %v264, 0.0
  %v268 = vrot.slane %v248, 1
  %v269 = vrot.slane %v249, 1
  %v270 = vsel %vm59, %v268, %v269
  %v271 = vsel %vm59, %v269, %v268
  %v272 = vsel %vm26, %v270, 0.0
  %v273 = vsel %vm27, %v271, 0.0
  %v274 = vmax.f32 %v266, %v272
  %v275 = vmax.f32 %v267, %v273
  %v276 = vmax.f32 %v248, %v274
  %v277 = vmax.f32 %v249, %v275
  %v278 = vmax.f32 %v254, %v260
  %v279 = vmax.f32 %v255, %v261
  %v280 = vmax.f32 %v276, %v278
  %v281 = vmax.f32 %v277, %v279
  %v282 = vrot.slane %v254, 7
  %v283 = vrot.slane %v255, 7
  %v284 = vsel %vm52, %v282, %v283
  %v285 = vsel %vm52, %v283, %v282
  %v286 = vsel %vm22, %v285, 0.0
  %v287 = vsel %vm23, %v284, 0.0
  %v288 = vrot.slane %v254, 1
  %v289 = vrot.slane %v255, 1
  %v290 = vsel %vm59, %v288, %v289
  %v291 = vsel %vm59, %v289, %v288
  %v292 = vsel %vm26, %v290, 0.0
  %v293 = vsel %vm27, %v291, 0.0
  %v294 = vrot.slane %v260, 7
  %v295 = vrot.slane %v261, 7
  %v296 = vsel %vm52, %v294, %v295
  %v297 = vsel %vm52, %v295, %v294
  %v298 = vsel %vm22, %v297, 0.0
  %v299 = vsel %vm23, %v296, 0.0
  %v300 = vrot.slane %v260, 1
  %v301 = vrot.slane %v261, 1
  %v302 = vsel %vm59, %v300, %v301
  %v303 = vsel %vm59, %v301, %v300
  %v304 = vsel %vm26, %v302, 0.0
  %v305 = vsel %vm27, %v303, 0.0
  %v306 = vmax.f32 %v286, %v292
  %v307 = vmax.f32 %v287, %v293
  %v308 = vmax.f32 %v298, %v304
  %v309 = vmax.f32 %v299, %v305
  %v310 = vmax.f32 %v306, %v308
  %v311 = vmax.f32 %v307, %v309
  %v312 = vmul.f32 %v310, 4.539993e-05
  %v313 = vmul.f32 %v311, 4.539993e-05
  %v314 = vmax.f32 %v280, %v312
  %v315 = vmax.f32 %v281, %v313
  %v316 = vmul.f32 %v14, %v314
  %v317 = vmul.f32 %v15, %v315
  %v318 = vmax.f32 %v316, %v248
  %v319 = vmax.f32 %v317, %v249
  %320 = vrot.lane.b32.xlu0 %v318, 1
  %v321 = vpop.permute.xlu0 %320
  %322 = vrot.lane.b32.xlu0 %v319, 1
  %v323 = vpop.permute.xlu0 %322
  %v324 = vsel %vm30, %v321, 0.0
  %v325 = vsel %vm31, %v323, 0.0
  %326 = vrot.lane.b32.xlu0 %v318, 127
  %v327 = vpop.permute.xlu0 %326
  %328 = vrot.lane.b32.xlu0 %v319, 127
  %v329 = vpop.permute.xlu0 %328
  %v330 = vsel %vm34, %v327, 0.0
  %v331 = vsel %vm35, %v329, 0.0
  %v332 = vrot.slane %v318, 7
  %v333 = vrot.slane %v319, 7
  %v334 = vsel %vm52, %v332, %v333
  %v335 = vsel %vm52, %v333, %v332
  %v336 = vsel %vm22, %v335, 0.0
  %v337 = vsel %vm23, %v334, 0.0
  %v338 = vrot.slane %v318, 1
  %v339 = vrot.slane %v319, 1
  %v340 = vsel %vm59, %v338, %v339
  %v341 = vsel %vm59, %v339, %v338
  %v342 = vsel %vm26, %v340, 0.0
  %v343 = vsel %vm27, %v341, 0.0
  %v344 = vmax.f32 %v336, %v342
  %v345 = vmax.f32 %v337, %v343
  %v346 = vmax.f32 %v318, %v344
  %v347 = vmax.f32 %v319, %v345
  %v348 = vmax.f32 %v324, %v330
  %v349 = vmax.f32 %v325, %v331
  %v350 = vmax.f32 %v346, %v348
  %v351 = vmax.f32 %v347, %v349
  %v352 = vrot.slane %v324, 7
  %v353 = vrot.slane %v325, 7
  %v354 = vsel %vm52, %v352, %v353
  %v355 = vsel %vm52, %v353, %v352
  %v356 = vsel %vm22, %v355, 0.0
  %v357 = vsel %vm23, %v354, 0.0
  %v358 = vrot.slane %v324, 1
  %v359 = vrot.slane %v325, 1
  %v360 = vsel %vm59, %v358, %v359
  %v361 = vsel %vm59, %v359, %v358
  %v362 = vsel %vm26, %v360, 0.0
  %v363 = vsel %vm27, %v361, 0.0
  %v364 = vrot.slane %v330, 7
  %v365 = vrot.slane %v331, 7
  %v366 = vsel %vm52, %v364, %v365
  %v367 = vsel %vm52, %v365, %v364
  %v368 = vsel %vm22, %v367, 0.0
  %v369 = vsel %vm23, %v366, 0.0
  %v370 = vrot.slane %v330, 1
  %v371 = vrot.slane %v331, 1
  %v372 = vsel %vm59, %v370, %v371
  %v373 = vsel %vm59, %v371, %v370
  %v374 = vsel %vm26, %v372, 0.0
  %v375 = vsel %vm27, %v373, 0.0
  %v376 = vmax.f32 %v356, %v362
  %v377 = vmax.f32 %v357, %v363
  %v378 = vmax.f32 %v368, %v374
  %v379 = vmax.f32 %v369, %v375
  %v380 = vmax.f32 %v376, %v378
  %v381 = vmax.f32 %v377, %v379
  %v382 = vmul.f32 %v380, 4.539993e-05
  %v383 = vmul.f32 %v381, 4.539993e-05
  %v384 = vmax.f32 %v350, %v382
  %v385 = vmax.f32 %v351, %v383
  %v386 = vmul.f32 %v14, %v384
  %v387 = vmul.f32 %v15, %v385
  %v388 = vmax.f32 %v386, %v318
  %v389 = vmax.f32 %v387, %v319
  %390 = vrot.lane.b32.xlu0 %v388, 1
  %v391 = vpop.permute.xlu0 %390
  %392 = vrot.lane.b32.xlu0 %v389, 1
  %v393 = vpop.permute.xlu0 %392
  %v394 = vsel %vm30, %v391, 0.0
  %v395 = vsel %vm31, %v393, 0.0
  %396 = vrot.lane.b32.xlu0 %v388, 127
  %v397 = vpop.permute.xlu0 %396
  %398 = vrot.lane.b32.xlu0 %v389, 127
  %v399 = vpop.permute.xlu0 %398
  %v400 = vsel %vm34, %v397, 0.0
  %v401 = vsel %vm35, %v399, 0.0
  %v402 = vrot.slane %v388, 7
  %v403 = vrot.slane %v389, 7
  %v404 = vsel %vm52, %v402, %v403
  %v405 = vsel %vm52, %v403, %v402
  %v406 = vsel %vm22, %v405, 0.0
  %v407 = vsel %vm23, %v404, 0.0
  %v408 = vrot.slane %v388, 1
  %v409 = vrot.slane %v389, 1
  %v410 = vsel %vm59, %v408, %v409
  %v411 = vsel %vm59, %v409, %v408
  %v412 = vsel %vm26, %v410, 0.0
  %v413 = vsel %vm27, %v411, 0.0
  %v414 = vmax.f32 %v406, %v412
  %v415 = vmax.f32 %v407, %v413
  %v416 = vmax.f32 %v388, %v414
  %v417 = vmax.f32 %v389, %v415
  %v418 = vmax.f32 %v394, %v400
  %v419 = vmax.f32 %v395, %v401
  %v420 = vmax.f32 %v416, %v418
  %v421 = vmax.f32 %v417, %v419
  %v422 = vrot.slane %v394, 7
  %v423 = vrot.slane %v395, 7
  %v424 = vsel %vm52, %v422, %v423
  %v425 = vsel %vm52, %v423, %v422
  %v426 = vsel %vm22, %v425, 0.0
  %v427 = vsel %vm23, %v424, 0.0
  %v428 = vrot.slane %v394, 1
  %v429 = vrot.slane %v395, 1
  %v430 = vsel %vm59, %v428, %v429
  %v431 = vsel %vm59, %v429, %v428
  %v432 = vsel %vm26, %v430, 0.0
  %v433 = vsel %vm27, %v431, 0.0
  %v434 = vrot.slane %v400, 7
  %v435 = vrot.slane %v401, 7
  %v436 = vsel %vm52, %v434, %v435
  %v437 = vsel %vm52, %v435, %v434
  %v438 = vsel %vm22, %v437, 0.0
  %v439 = vsel %vm23, %v436, 0.0
  %v440 = vrot.slane %v400, 1
  %v441 = vrot.slane %v401, 1
  %v442 = vsel %vm59, %v440, %v441
  %v443 = vsel %vm59, %v441, %v440
  %v444 = vsel %vm26, %v442, 0.0
  %v445 = vsel %vm27, %v443, 0.0
  %v446 = vmax.f32 %v426, %v432
  %v447 = vmax.f32 %v427, %v433
  %v448 = vmax.f32 %v438, %v444
  %v449 = vmax.f32 %v439, %v445
  %v450 = vmax.f32 %v446, %v448
  %v451 = vmax.f32 %v447, %v449
  %v452 = vmul.f32 %v450, 4.539993e-05
  %v453 = vmul.f32 %v451, 4.539993e-05
  %v454 = vmax.f32 %v420, %v452
  %v455 = vmax.f32 %v421, %v453
  %v456 = vmul.f32 %v14, %v454
  %v457 = vmul.f32 %v15, %v455
  %v458 = vmax.f32 %v456, %v388
  %v459 = vmax.f32 %v457, %v389
  %460 = vrot.lane.b32.xlu0 %v458, 1
  %v461 = vpop.permute.xlu0 %460
  %462 = vrot.lane.b32.xlu0 %v459, 1
  %v463 = vpop.permute.xlu0 %462
  %v464 = vsel %vm30, %v461, 0.0
  %v465 = vsel %vm31, %v463, 0.0
  %466 = vrot.lane.b32.xlu0 %v458, 127
  %v467 = vpop.permute.xlu0 %466
  %468 = vrot.lane.b32.xlu0 %v459, 127
  %v469 = vpop.permute.xlu0 %468
  %v470 = vsel %vm34, %v467, 0.0
  %v471 = vsel %vm35, %v469, 0.0
  %v472 = vrot.slane %v458, 7
  %v473 = vrot.slane %v459, 7
  %v474 = vsel %vm52, %v472, %v473
  %v475 = vsel %vm52, %v473, %v472
  %v476 = vsel %vm22, %v475, 0.0
  %v477 = vsel %vm23, %v474, 0.0
  %v478 = vrot.slane %v458, 1
  %v479 = vrot.slane %v459, 1
  %v480 = vsel %vm59, %v478, %v479
  %v481 = vsel %vm59, %v479, %v478
  %v482 = vsel %vm26, %v480, 0.0
  %v483 = vsel %vm27, %v481, 0.0
  %v484 = vmax.f32 %v476, %v482
  %v485 = vmax.f32 %v477, %v483
  %v486 = vmax.f32 %v458, %v484
  %v487 = vmax.f32 %v459, %v485
  %v488 = vmax.f32 %v464, %v470
  %v489 = vmax.f32 %v465, %v471
  %v490 = vmax.f32 %v486, %v488
  %v491 = vmax.f32 %v487, %v489
  %v492 = vrot.slane %v464, 7
  %v493 = vrot.slane %v465, 7
  %v494 = vsel %vm52, %v492, %v493
  %v495 = vsel %vm52, %v493, %v492
  %v496 = vsel %vm22, %v495, 0.0
  %v497 = vsel %vm23, %v494, 0.0
  %v498 = vrot.slane %v464, 1
  %v499 = vrot.slane %v465, 1
  %v500 = vsel %vm59, %v498, %v499
  %v501 = vsel %vm59, %v499, %v498
  %v502 = vsel %vm26, %v500, 0.0
  %v503 = vsel %vm27, %v501, 0.0
  %v504 = vrot.slane %v470, 7
  %v505 = vrot.slane %v471, 7
  %v506 = vsel %vm52, %v504, %v505
  %v507 = vsel %vm52, %v505, %v504
  %v508 = vsel %vm22, %v507, 0.0
  %v509 = vsel %vm23, %v506, 0.0
  %v510 = vrot.slane %v470, 1
  %v511 = vrot.slane %v471, 1
  %v512 = vsel %vm59, %v510, %v511
  %v513 = vsel %vm59, %v511, %v510
  %v514 = vsel %vm26, %v512, 0.0
  %v515 = vsel %vm27, %v513, 0.0
  %v516 = vmax.f32 %v496, %v502
  %v517 = vmax.f32 %v497, %v503
  %v518 = vmax.f32 %v508, %v514
  %v519 = vmax.f32 %v509, %v515
  %v520 = vmax.f32 %v516, %v518
  %v521 = vmax.f32 %v517, %v519
  %v522 = vmul.f32 %v520, 4.539993e-05
  %v523 = vmul.f32 %v521, 4.539993e-05
  %v524 = vmax.f32 %v490, %v522
  %v525 = vmax.f32 %v491, %v523
  %v526 = vmul.f32 %v14, %v524
  %v527 = vmul.f32 %v15, %v525
  %v528 = vmax.f32 %v526, %v458
  %v529 = vmax.f32 %v527, %v459
  %530 = vrot.lane.b32.xlu0 %v528, 1
  %v531 = vpop.permute.xlu0 %530
  %532 = vrot.lane.b32.xlu0 %v529, 1
  %v533 = vpop.permute.xlu0 %532
  %v534 = vsel %vm30, %v531, 0.0
  %v535 = vsel %vm31, %v533, 0.0
  %536 = vrot.lane.b32.xlu0 %v528, 127
  %v537 = vpop.permute.xlu0 %536
  %538 = vrot.lane.b32.xlu0 %v529, 127
  %v539 = vpop.permute.xlu0 %538
  %v540 = vsel %vm34, %v537, 0.0
  %v541 = vsel %vm35, %v539, 0.0
  %v542 = vrot.slane %v528, 7
  %v543 = vrot.slane %v529, 7
  %v544 = vsel %vm52, %v542, %v543
  %v545 = vsel %vm52, %v543, %v542
  %v546 = vsel %vm22, %v545, 0.0
  %v547 = vsel %vm23, %v544, 0.0
  %v548 = vrot.slane %v528, 1
  %v549 = vrot.slane %v529, 1
  %v550 = vsel %vm59, %v548, %v549
  %v551 = vsel %vm59, %v549, %v548
  %v552 = vsel %vm26, %v550, 0.0
  %v553 = vsel %vm27, %v551, 0.0
  %v554 = vmax.f32 %v546, %v552
  %v555 = vmax.f32 %v547, %v553
  %v556 = vmax.f32 %v528, %v554
  %v557 = vmax.f32 %v529, %v555
  %v558 = vmax.f32 %v534, %v540
  %v559 = vmax.f32 %v535, %v541
  %v560 = vmax.f32 %v556, %v558
  %v561 = vmax.f32 %v557, %v559
  %v562 = vrot.slane %v534, 7
  %v563 = vrot.slane %v535, 7
  %v564 = vsel %vm52, %v562, %v563
  %v565 = vsel %vm52, %v563, %v562
  %v566 = vsel %vm22, %v565, 0.0
  %v567 = vsel %vm23, %v564, 0.0
  %v568 = vrot.slane %v534, 1
  %v569 = vrot.slane %v535, 1
  %v570 = vsel %vm59, %v568, %v569
  %v571 = vsel %vm59, %v569, %v568
  %v572 = vsel %vm26, %v570, 0.0
  %v573 = vsel %vm27, %v571, 0.0
  %v574 = vrot.slane %v540, 7
  %v575 = vrot.slane %v541, 7
  %v576 = vsel %vm52, %v574, %v575
  %v577 = vsel %vm52, %v575, %v574
  %v578 = vsel %vm22, %v577, 0.0
  %v579 = vsel %vm23, %v576, 0.0
  %v580 = vrot.slane %v540, 1
  %v581 = vrot.slane %v541, 1
  %v582 = vsel %vm59, %v580, %v581
  %v583 = vsel %vm59, %v581, %v580
  %v584 = vsel %vm26, %v582, 0.0
  %v585 = vsel %vm27, %v583, 0.0
  %v586 = vmax.f32 %v566, %v572
  %v587 = vmax.f32 %v567, %v573
  %v588 = vmax.f32 %v578, %v584
  %v589 = vmax.f32 %v579, %v585
  %v590 = vmax.f32 %v586, %v588
  %v591 = vmax.f32 %v587, %v589
  %v592 = vmul.f32 %v590, 4.539993e-05
  %v593 = vmul.f32 %v591, 4.539993e-05
  %v594 = vmax.f32 %v560, %v592
  %v595 = vmax.f32 %v561, %v593
  %v596 = vmul.f32 %v14, %v594
  %v597 = vmul.f32 %v15, %v595
  %v598 = vmax.f32 %v596, %v528
  %v599 = vmax.f32 %v597, %v529
  %600 = vrot.lane.b32.xlu0 %v598, 1
  %v601 = vpop.permute.xlu0 %600
  %602 = vrot.lane.b32.xlu0 %v599, 1
  %v603 = vpop.permute.xlu0 %602
  %v604 = vsel %vm30, %v601, 0.0
  %v605 = vsel %vm31, %v603, 0.0
  %606 = vrot.lane.b32.xlu0 %v598, 127
  %v607 = vpop.permute.xlu0 %606
  %608 = vrot.lane.b32.xlu0 %v599, 127
  %v609 = vpop.permute.xlu0 %608
  %v610 = vsel %vm34, %v607, 0.0
  %v611 = vsel %vm35, %v609, 0.0
  %v612 = vrot.slane %v598, 7
  %v613 = vrot.slane %v599, 7
  %v614 = vsel %vm52, %v612, %v613
  %v615 = vsel %vm52, %v613, %v612
  %v616 = vsel %vm22, %v615, 0.0
  %v617 = vsel %vm23, %v614, 0.0
  %v618 = vrot.slane %v598, 1
  %v619 = vrot.slane %v599, 1
  %v620 = vsel %vm59, %v618, %v619
  %v621 = vsel %vm59, %v619, %v618
  %v622 = vsel %vm26, %v620, 0.0
  %v623 = vsel %vm27, %v621, 0.0
  %v624 = vmax.f32 %v616, %v622
  %v625 = vmax.f32 %v617, %v623
  %v626 = vmax.f32 %v598, %v624
  %v627 = vmax.f32 %v599, %v625
  %v628 = vmax.f32 %v604, %v610
  %v629 = vmax.f32 %v605, %v611
  %v630 = vmax.f32 %v626, %v628
  %v631 = vmax.f32 %v627, %v629
  %v632 = vrot.slane %v604, 7
  %v633 = vrot.slane %v605, 7
  %v634 = vsel %vm52, %v632, %v633
  %v635 = vsel %vm52, %v633, %v632
  %v636 = vsel %vm22, %v635, 0.0
  %v637 = vsel %vm23, %v634, 0.0
  %v638 = vrot.slane %v604, 1
  %v639 = vrot.slane %v605, 1
  %v640 = vsel %vm59, %v638, %v639
  %v641 = vsel %vm59, %v639, %v638
  %v642 = vsel %vm26, %v640, 0.0
  %v643 = vsel %vm27, %v641, 0.0
  %v644 = vrot.slane %v610, 7
  %v645 = vrot.slane %v611, 7
  %v646 = vsel %vm52, %v644, %v645
  %v647 = vsel %vm52, %v645, %v644
  %v648 = vsel %vm22, %v647, 0.0
  %v649 = vsel %vm23, %v646, 0.0
  %v650 = vrot.slane %v610, 1
  %v651 = vrot.slane %v611, 1
  %v652 = vsel %vm59, %v650, %v651
  %v653 = vsel %vm59, %v651, %v650
  %v654 = vsel %vm26, %v652, 0.0
  %v655 = vsel %vm27, %v653, 0.0
  %v656 = vmax.f32 %v636, %v642
  %v657 = vmax.f32 %v637, %v643
  %v658 = vmax.f32 %v648, %v654
  %v659 = vmax.f32 %v649, %v655
  %v660 = vmax.f32 %v656, %v658
  %v661 = vmax.f32 %v657, %v659
  %v662 = vmul.f32 %v660, 4.539993e-05
  %v663 = vmul.f32 %v661, 4.539993e-05
  %v664 = vmax.f32 %v630, %v662
  %v665 = vmax.f32 %v631, %v663
  %v666 = vmul.f32 %v14, %v664
  %v667 = vmul.f32 %v15, %v665
  %v668 = vmax.f32 %v666, %v598
  %v669 = vmax.f32 %v667, %v599
  %670 = vrot.lane.b32.xlu0 %v668, 1
  %v671 = vpop.permute.xlu0 %670
  %672 = vrot.lane.b32.xlu0 %v669, 1
  %v673 = vpop.permute.xlu0 %672
  %v674 = vsel %vm30, %v671, 0.0
  %v675 = vsel %vm31, %v673, 0.0
  %676 = vrot.lane.b32.xlu0 %v668, 127
  %v677 = vpop.permute.xlu0 %676
  %678 = vrot.lane.b32.xlu0 %v669, 127
  %v679 = vpop.permute.xlu0 %678
  %v680 = vsel %vm34, %v677, 0.0
  %v681 = vsel %vm35, %v679, 0.0
  %v682 = vrot.slane %v668, 7
  %v683 = vrot.slane %v669, 7
  %v684 = vsel %vm52, %v682, %v683
  %v685 = vsel %vm52, %v683, %v682
  %v686 = vsel %vm22, %v685, 0.0
  %v687 = vsel %vm23, %v684, 0.0
  %v688 = vrot.slane %v668, 1
  %v689 = vrot.slane %v669, 1
  %v690 = vsel %vm59, %v688, %v689
  %v691 = vsel %vm59, %v689, %v688
  %v692 = vsel %vm26, %v690, 0.0
  %v693 = vsel %vm27, %v691, 0.0
  %v694 = vmax.f32 %v686, %v692
  %v695 = vmax.f32 %v687, %v693
  %v696 = vmax.f32 %v668, %v694
  %v697 = vmax.f32 %v669, %v695
  %v698 = vmax.f32 %v674, %v680
  %v699 = vmax.f32 %v675, %v681
  %v700 = vmax.f32 %v696, %v698
  %v701 = vmax.f32 %v697, %v699
  %v702 = vrot.slane %v674, 7
  %v703 = vrot.slane %v675, 7
  %v704 = vsel %vm52, %v702, %v703
  %v705 = vsel %vm52, %v703, %v702
  %v706 = vsel %vm22, %v705, 0.0
  %v707 = vsel %vm23, %v704, 0.0
  %v708 = vrot.slane %v674, 1
  %v709 = vrot.slane %v675, 1
  %v710 = vsel %vm59, %v708, %v709
  %v711 = vsel %vm59, %v709, %v708
  %v712 = vsel %vm26, %v710, 0.0
  %v713 = vsel %vm27, %v711, 0.0
  %v714 = vrot.slane %v680, 7
  %v715 = vrot.slane %v681, 7
  %v716 = vsel %vm52, %v714, %v715
  %v717 = vsel %vm52, %v715, %v714
  %v718 = vsel %vm22, %v717, 0.0
  %v719 = vsel %vm23, %v716, 0.0
  %v720 = vrot.slane %v680, 1
  %v721 = vrot.slane %v681, 1
  %v722 = vsel %vm59, %v720, %v721
  %v723 = vsel %vm59, %v721, %v720
  %v724 = vsel %vm26, %v722, 0.0
  %v725 = vsel %vm27, %v723, 0.0
  %v726 = vmax.f32 %v706, %v712
  %v727 = vmax.f32 %v707, %v713
  %v728 = vmax.f32 %v718, %v724
  %v729 = vmax.f32 %v719, %v725
  %v730 = vmax.f32 %v726, %v728
  %v731 = vmax.f32 %v727, %v729
  %v732 = vmul.f32 %v730, 4.539993e-05
  %v733 = vmul.f32 %v731, 4.539993e-05
  %v734 = vmax.f32 %v700, %v732
  %v735 = vmax.f32 %v701, %v733
  %v736 = vmul.f32 %v14, %v734
  %v737 = vmul.f32 %v15, %v735
  %v738 = vmax.f32 %v736, %v668
  %v739 = vmax.f32 %v737, %v669
  %v740 = vsub.f32 %v738, %v16
  %v741 = vsub.f32 %v739, %v17
  %v742 = vmax.f32 %v740, 0.0
  %v743 = vmax.f32 %v741, 0.0
  %744 = vst [vmem:[%s3] sm:$0xff] %v742
  %745 = vst [vmem:[%s3 + $0x8] sm:$0xff] %v743
  // Predicated region
  $region14: #{mvprop2d_forward.1} parent=0 // pred_check
    _
  $region15: #{mvprop2d_forward.1} parent=0 // pred_check_branch
    %747 = sbr.rel (0) target = $region17
  $region16: #{mvprop2d_forward.1} parent=0 // pred_region
    _
  $region17: #{mvprop2d_forward.1} parent=0 // pred_fallthru
    _
  // Predicated region
  $region18: #{mvprop2d_forward.1} parent=0 // pred_check
    _
  $region19: #{mvprop2d_forward.1} parent=0 // pred_check_branch
    %749 = sbr.rel (0) target = $region21
  $region20: #{mvprop2d_forward.1} parent=0 // pred_region
    _
  $region21: #{mvprop2d_forward.1} parent=0 // pred_fallthru
    _

</llo_original>
